<compile_context>
chip_gen: v5e
topology: v5e:2x2
jax: 0.10.0
libtpu: 0.0.40
codegen_flags: <defaults>
</compile_context>

<pallas_src>
import jax
import jax.numpy as jnp
from jax.experimental import pallas as pl
from jax.experimental.pallas import tpu as pltpu

# ---- model dims (from the PyTorch module) ----
INPUT_DIM = 108            # 54 * 2
OUTPUT_DIM = 54
LATENT_DIM = 10
INTERMEDIATE_DIM = 400

# ---- MXU / lane friendly padded dims ----
PAD_IN = 128               # 108 -> 128   (K of fc1)
PAD_MID = 512              # 400 -> 512   (N of fc1/fc3, K of fc21|22 / fc4)
PAD_LAT = 16               # 10  -> 16    (K of fc3, width of mu / logvar)
PAD_HEADS = 64             # fused mu|logvar head: mu @ [0:16), logvar @ [16:32)
PAD_OUT = 64               # 54  -> 64    (N of fc4)
SLAB = PAD_OUT + PAD_HEADS  # 128-lane dense output slab

ACT_DTYPE = jnp.bfloat16   # streamed activation dtype (x, eps, output slab)


# --------------------------------------------------------------------------
# kernel
# --------------------------------------------------------------------------
def _vae_kernel(x_ref, eps_ref,
                w1_ref, b1_ref,
                wh_ref, bh_ref,
                w3_ref, b3_ref,
                w4_ref, b4_ref,
                out_ref):
    # ---- encode ----  (x already bf16; f32 MXU accumulation)
    h1 = jnp.dot(x_ref[...], w1_ref[...],
                 preferred_element_type=jnp.float32) + b1_ref[...]
    h1 = jnp.maximum(h1, 0.0).astype(wh_ref.dtype)              # relu, one cast

    # fused mu / logvar head: one MXU pass, one h1 read
    heads = jnp.dot(h1, wh_ref[...],
                    preferred_element_type=jnp.float32) + bh_ref[...]
    mu = heads[:, 0:PAD_LAT]                                    # (TB, 16) f32
    logvar = heads[:, PAD_LAT:2 * PAD_LAT]                      # (TB, 16) f32

    # ---- reparameterize ----  (padded lanes: mu=0, logvar=0, eps=0 -> z=0)
    std = jnp.exp(0.5 * logvar)                                 # EUP
    z = (mu + eps_ref[...].astype(jnp.float32) * std).astype(w3_ref.dtype)

    # ---- decode ----
    h3 = jnp.dot(z, w3_ref[...],
                 preferred_element_type=jnp.float32) + b3_ref[...]
    h3 = jnp.maximum(h3, 0.0).astype(w4_ref.dtype)
    recon = jnp.dot(h3, w4_ref[...],
                    preferred_element_type=jnp.float32) + b4_ref[...]

    # lane-dense 128-wide output slab: [recon(64) | mu(16) logvar(16) pad(32)]
    out_ref[...] = jnp.concatenate([recon, heads], axis=-1).astype(out_ref.dtype)


# --------------------------------------------------------------------------
# params
# --------------------------------------------------------------------------
def init_params(key):
    """PyTorch-Linear-style init; weights stored transposed as (in, out)."""
    def linear(k, fan_in, fan_out):
        kw, kb = jax.random.split(k)
        bound = 1.0 / jnp.sqrt(fan_in)
        w = jax.random.uniform(kw, (fan_in, fan_out), jnp.float32, -bound, bound)
        b = jax.random.uniform(kb, (fan_out,), jnp.float32, -bound, bound)
        return w, b

    k1, k21, k22, k3, k4 = jax.random.split(key, 5)
    return dict(
        fc1=linear(k1, INPUT_DIM, INTERMEDIATE_DIM),
        fc21=linear(k21, INTERMEDIATE_DIM, LATENT_DIM),
        fc22=linear(k22, INTERMEDIATE_DIM, LATENT_DIM),
        fc3=linear(k3, LATENT_DIM, INTERMEDIATE_DIM),
        fc4=linear(k4, INTERMEDIATE_DIM, OUTPUT_DIM),
    )


def pack_params(params, weight_dtype=jnp.bfloat16):
    """Pad / fuse weights into MXU-friendly shapes (zero padding is exact)."""
    w1, b1 = params["fc1"]
    w21, b21 = params["fc21"]
    w22, b22 = params["fc22"]
    w3, b3 = params["fc3"]
    w4, b4 = params["fc4"]

    d_mid = PAD_MID - INTERMEDIATE_DIM

    # fc1: pad K 108 -> 128, N 400 -> 512
    w1p = jnp.pad(w1, ((0, PAD_IN - INPUT_DIM), (0, d_mid)))
    b1p = jnp.pad(b1, (0, d_mid)).reshape(1, PAD_MID)

    # fused mu/logvar head (512, 64): mu cols [0:10), logvar cols [16:26)
    whp = jnp.zeros((PAD_MID, PAD_HEADS), jnp.float32)
    whp = whp.at[:INTERMEDIATE_DIM, 0:LATENT_DIM].set(w21)
    whp = whp.at[:INTERMEDIATE_DIM, PAD_LAT:PAD_LAT + LATENT_DIM].set(w22)
    bhp = jnp.zeros((1, PAD_HEADS), jnp.float32)
    bhp = bhp.at[0, 0:LATENT_DIM].set(b21)
    bhp = bhp.at[0, PAD_LAT:PAD_LAT + LATENT_DIM].set(b22)

    # fc3: pad K 10 -> 16, N 400 -> 512
    w3p = jnp.pad(w3, ((0, PAD_LAT - LATENT_DIM), (0, d_mid)))
    b3p = jnp.pad(b3, (0, d_mid)).reshape(1, PAD_MID)

    # fc4: pad K 400 -> 512, N 54 -> 64
    w4p = jnp.pad(w4, ((0, d_mid), (0, PAD_OUT - OUTPUT_DIM)))
    b4p = jnp.pad(b4, (0, PAD_OUT - OUTPUT_DIM)).reshape(1, PAD_OUT)

    wd = weight_dtype
    return (w1p.astype(wd), b1p, whp.astype(wd), bhp,
            w3p.astype(wd), b3p, w4p.astype(wd), b4p)


# --------------------------------------------------------------------------
# wrapper
# --------------------------------------------------------------------------
def _choose_tile_b(n_rows, cap=1024, min_blocks=2):
    """Batch tile: <= cap, multiple of 16 (bf16 sublane packing), with at
    least `min_blocks` grid blocks when B allows (v7x megacore), and chosen
    to minimize batch padding for awkward B."""
    n_blocks = max(pl.cdiv(n_rows, cap),
                   min(min_blocks, pl.cdiv(n_rows, 16)),
                   1)
    tb = ((pl.cdiv(n_rows, n_blocks) + 15) // 16) * 16
    return max(16, tb)


def sequential_vae_forward(x, eps, packed, tile_b=None):
    """x: any shape reshapable to (-1, 108); eps: (B, 10) standard normal."""
    x2d = jnp.reshape(x, (-1, INPUT_DIM))
    B = x2d.shape[0]
    if eps.shape != (B, LATENT_DIM):
        raise ValueError(f"eps must have shape {(B, LATENT_DIM)}, got {eps.shape}")

    tb = _choose_tile_b(B) if tile_b is None else int(tile_b)
    assert tb % 16 == 0, "tile_b must be a multiple of 16 (bf16 sublane packing)"
    n_blocks = pl.cdiv(B, tb)
    Bp = n_blocks * tb

    # single fused cast+pad per streamed input (no zeros().at[].set() scatter)
    xp = jnp.pad(x2d.astype(ACT_DTYPE),
                 ((0, Bp - B), (0, PAD_IN - INPUT_DIM)))
    epsp = jnp.pad(eps.astype(ACT_DTYPE),
                   ((0, Bp - B), (0, PAD_LAT - LATENT_DIM)))

    (w1p, b1p, whp, bhp, w3p, b3p, w4p, b4p) = packed

    def _resident(a):   # weights / biases: same (full) block every grid step
        return pl.BlockSpec(a.shape, lambda i: (0,) * a.ndim)

    weight_bytes = sum(int(a.size) * a.dtype.itemsize for a in packed)
    act_bytes = (int(xp.size) + int(epsp.size) + Bp * SLAB) * ACT_DTYPE.dtype.itemsize
    cost = pl.CostEstimate(
        flops=2 * Bp * (PAD_IN * PAD_MID
                        + PAD_MID * PAD_HEADS
                        + PAD_LAT * PAD_MID
                        + PAD_MID * PAD_OUT),
        transcendentals=Bp * PAD_LAT,
        bytes_accessed=act_bytes + weight_bytes,
    )

    slab = pl.pallas_call(
        _vae_kernel,
        out_shape=jax.ShapeDtypeStruct((Bp, SLAB), ACT_DTYPE),
        grid=(n_blocks,),
        in_specs=[
            pl.BlockSpec((tb, PAD_IN), lambda i: (i, 0)),     # x tile
            pl.BlockSpec((tb, PAD_LAT), lambda i: (i, 0)),    # eps tile
            _resident(w1p), _resident(b1p),
            _resident(whp), _resident(bhp),
            _resident(w3p), _resident(b3p),
            _resident(w4p), _resident(b4p),
        ],
        out_specs=pl.BlockSpec((tb, SLAB), lambda i: (i, 0)),
        compiler_params=pltpu.CompilerParams(
            dimension_semantics=("parallel",)),
        cost_estimate=cost,
    )(xp, epsp, w1p, b1p, whp, bhp, w3p, b3p, w4p, b4p)

    slab = slab.astype(jnp.float32)
    recon = slab[:B, :OUTPUT_DIM]
    mu = slab[:B, PAD_OUT:PAD_OUT + LATENT_DIM]
    logvar = slab[:B, PAD_OUT + PAD_LAT:PAD_OUT + PAD_LAT + LATENT_DIM]
    return recon, mu, logvar


# --------------------------------------------------------------------------
# references
# --------------------------------------------------------------------------
def reference_forward_packed(x, eps, packed):
    """Same math as the kernel (bf16 weights/activations, f32 accumulation)."""
    (w1p, b1p, whp, bhp, w3p, b3p, w4p, b4p) = packed
    x2d = jnp.reshape(x, (-1, INPUT_DIM))
    xp = jnp.pad(x2d.astype(ACT_DTYPE), ((0, 0), (0, PAD_IN - INPUT_DIM)))
    epsp = jnp.pad(eps.astype(ACT_DTYPE), ((0, 0), (0, PAD_LAT - LATENT_DIM)))
    f32 = jnp.float32
    h1 = jnp.maximum(jnp.dot(xp, w1p, preferred_element_type=f32) + b1p, 0.0)
    heads = jnp.dot(h1.astype(whp.dtype), whp, preferred_element_type=f32) + bhp
    mu, lv = heads[:, :PAD_LAT], heads[:, PAD_LAT:2 * PAD_LAT]
    z = mu + epsp.astype(f32) * jnp.exp(0.5 * lv)
    h3 = jnp.maximum(jnp.dot(z.astype(w3p.dtype), w3p,
                             preferred_element_type=f32) + b3p, 0.0)
    recon = jnp.dot(h3.astype(w4p.dtype), w4p, preferred_element_type=f32) + b4p
    slab = jnp.concatenate([recon, heads], -1).astype(ACT_DTYPE).astype(f32)
    return (slab[:, :OUTPUT_DIM],
            slab[:, PAD_OUT:PAD_OUT + LATENT_DIM],
            slab[:, PAD_OUT + PAD_LAT:PAD_OUT + PAD_LAT + LATENT_DIM])


def reference_forward_f32(x, eps, params):
    """Original module semantics in plain f32 (loose semantic check)."""
    w1, b1 = params["fc1"]; w21, b21 = params["fc21"]; w22, b22 = params["fc22"]
    w3, b3 = params["fc3"]; w4, b4 = params["fc4"]
    x2d = jnp.reshape(x, (-1, INPUT_DIM)).astype(jnp.float32)
    h1 = jnp.maximum(x2d @ w1 + b1, 0.0)
    mu = h1 @ w21 + b21
    logvar = h1 @ w22 + b22
    z = mu + eps * jnp.exp(0.5 * logvar)
    h3 = jnp.maximum(z @ w3 + b3, 0.0)
    return h3 @ w4 + b4, mu, logvar


# --------------------------------------------------------------------------
if __name__ == "__main__":
    key = jax.random.PRNGKey(0)
    kx, keps, kp = jax.random.split(key, 3)

    # flattened batch B=20 (not a tile multiple -> exercises padding + 2 grid blocks)
    B = 20
    x = jax.random.normal(kx, (B, 2, 54), jnp.float32)     # view(-1, 108) -> (20, 108)
    eps = jax.random.normal(keps, (B, LATENT_DIM), jnp.float32)

    params = init_params(kp)
    packed = pack_params(params)                            # bf16, fused, padded

    recon, mu, logvar = sequential_vae_forward(x, eps, packed)
    jax.block_until_ready((recon, mu, logvar))

    assert recon.shape == (B, OUTPUT_DIM)
    assert mu.shape == (B, LATENT_DIM) and logvar.shape == (B, LATENT_DIM)

    # strict check: identical padded/bf16 math in pure JAX
    r_s, mu_s, lv_s = reference_forward_packed(x, eps, packed)
    assert jnp.allclose(recon, r_s, atol=2e-2, rtol=2e-2)
    assert jnp.allclose(mu, mu_s, atol=2e-2, rtol=2e-2)
    assert jnp.allclose(logvar, lv_s, atol=2e-2, rtol=2e-2)

    # loose check: original f32 module semantics (bf16 quantization only)
    r_f, mu_f, lv_f = reference_forward_f32(x, eps, params)
    assert jnp.allclose(recon, r_f, atol=0.1, rtol=0.1)
    assert jnp.allclose(mu, mu_f, atol=0.1, rtol=0.1)
    assert jnp.allclose(logvar, lv_f, atol=0.1, rtol=0.1)

    print("KERNEL_OK")
</pallas_src>

<mosaic_0001>
module attributes {stable_mosaic.version = 11 : i64} {
  func.func @_vae_kernel(%arg0: i32, %arg1: memref<16x128xbf16, #tpu.memory_space<vmem>>, %arg2: memref<16x16xbf16, #tpu.memory_space<vmem>>, %arg3: memref<128x512xbf16, #tpu.memory_space<vmem>>, %arg4: memref<1x512xf32, #tpu.memory_space<vmem>>, %arg5: memref<512x64xbf16, #tpu.memory_space<vmem>>, %arg6: memref<1x64xf32, #tpu.memory_space<vmem>>, %arg7: memref<16x512xbf16, #tpu.memory_space<vmem>>, %arg8: memref<1x512xf32, #tpu.memory_space<vmem>>, %arg9: memref<512x64xbf16, #tpu.memory_space<vmem>>, %arg10: memref<1x64xf32, #tpu.memory_space<vmem>>, %arg11: memref<16x128xbf16, #tpu.memory_space<vmem>>) attributes {dimension_semantics = [#tpu.dimension_semantics<parallel>], iteration_bounds = array<i64: 2>, scalar_prefetch = 0 : i64, scratch_operands = 0 : i64, tpu.core_type = #tpu.core_type<tc>, window_params = [{transform_indices = @transform_0, window_bounds = array<i64: 16, 128>}, {transform_indices = @transform_1, window_bounds = array<i64: 16, 16>}, {pipeline_mode = #tpu.pipeline_mode<synchronous>, transform_indices = @transform_2, window_bounds = array<i64: 128, 512>}, {pipeline_mode = #tpu.pipeline_mode<synchronous>, transform_indices = @transform_3, window_bounds = array<i64: 1, 512>}, {pipeline_mode = #tpu.pipeline_mode<synchronous>, transform_indices = @transform_4, window_bounds = array<i64: 512, 64>}, {pipeline_mode = #tpu.pipeline_mode<synchronous>, transform_indices = @transform_5, window_bounds = array<i64: 1, 64>}, {pipeline_mode = #tpu.pipeline_mode<synchronous>, transform_indices = @transform_6, window_bounds = array<i64: 16, 512>}, {pipeline_mode = #tpu.pipeline_mode<synchronous>, transform_indices = @transform_7, window_bounds = array<i64: 1, 512>}, {pipeline_mode = #tpu.pipeline_mode<synchronous>, transform_indices = @transform_8, window_bounds = array<i64: 512, 64>}, {pipeline_mode = #tpu.pipeline_mode<synchronous>, transform_indices = @transform_9, window_bounds = array<i64: 1, 64>}, {transform_indices = @transform_10, window_bounds = array<i64: 16, 128>}]} {
    %c0 = arith.constant 0 : index
    %c0_0 = arith.constant 0 : index
    %0 = vector.load %arg1[%c0, %c0_0] : memref<16x128xbf16, #tpu.memory_space<vmem>>, vector<16x128xbf16>
    %c0_1 = arith.constant 0 : index
    %c0_2 = arith.constant 0 : index
    %1 = vector.load %arg3[%c0_1, %c0_2] : memref<128x512xbf16, #tpu.memory_space<vmem>>, vector<128x512xbf16>
    %cst = arith.constant dense<0.000000e+00> : vector<16x512xf32>
    %2 = tpu.matmul %0, %1, %cst {dimension_numbers = #tpu.dot_dimension_numbers<[1], [0], [0], [1], [0, 0, 1, 1], [], []>} : vector<16x128xbf16>, vector<128x512xbf16>, vector<16x512xf32> -> vector<16x512xf32>
    %c0_3 = arith.constant 0 : index
    %c0_4 = arith.constant 0 : index
    %3 = vector.load %arg4[%c0_3, %c0_4] : memref<1x512xf32, #tpu.memory_space<vmem>>, vector<1x512xf32>
    %4 = vector.broadcast %3 : vector<1x512xf32> to vector<16x512xf32>
    %5 = arith.addf %2, %4 : vector<16x512xf32>
    %cst_5 = arith.constant 0.000000e+00 : f32
    %6 = vector.broadcast %cst_5 : f32 to vector<16x512xf32>
    %7 = arith.maximumf %5, %6 : vector<16x512xf32>
    %8 = arith.truncf %7 : vector<16x512xf32> to vector<16x512xbf16>
    %c0_6 = arith.constant 0 : index
    %c0_7 = arith.constant 0 : index
    %9 = vector.load %arg5[%c0_6, %c0_7] : memref<512x64xbf16, #tpu.memory_space<vmem>>, vector<512x64xbf16>
    %cst_8 = arith.constant dense<0.000000e+00> : vector<16x64xf32>
    %10 = tpu.matmul %8, %9, %cst_8 {dimension_numbers = #tpu.dot_dimension_numbers<[1], [0], [0], [1], [0, 0, 1, 1], [], []>} : vector<16x512xbf16>, vector<512x64xbf16>, vector<16x64xf32> -> vector<16x64xf32>
    %c0_9 = arith.constant 0 : index
    %c0_10 = arith.constant 0 : index
    %11 = vector.load %arg6[%c0_9, %c0_10] : memref<1x64xf32, #tpu.memory_space<vmem>>, vector<1x64xf32>
    %12 = vector.broadcast %11 : vector<1x64xf32> to vector<16x64xf32>
    %13 = arith.addf %10, %12 : vector<16x64xf32>
    %14 = vector.extract_strided_slice %13 {offsets = [0, 0], sizes = [16, 16], strides = [1, 1]} : vector<16x64xf32> to vector<16x16xf32>
    %15 = vector.extract_strided_slice %13 {offsets = [0, 16], sizes = [16, 16], strides = [1, 1]} : vector<16x64xf32> to vector<16x16xf32>
    %cst_11 = arith.constant 5.000000e-01 : f32
    %16 = vector.broadcast %cst_11 : f32 to vector<16x16xf32>
    %17 = arith.mulf %16, %15 : vector<16x16xf32>
    %18 = math.exp %17 : vector<16x16xf32>
    %c0_12 = arith.constant 0 : index
    %c0_13 = arith.constant 0 : index
    %19 = vector.load %arg2[%c0_12, %c0_13] : memref<16x16xbf16, #tpu.memory_space<vmem>>, vector<16x16xbf16>
    %20 = arith.extf %19 : vector<16x16xbf16> to vector<16x16xf32>
    %21 = arith.mulf %20, %18 : vector<16x16xf32>
    %22 = arith.addf %14, %21 : vector<16x16xf32>
    %23 = arith.truncf %22 : vector<16x16xf32> to vector<16x16xbf16>
    %c0_14 = arith.constant 0 : index
    %c0_15 = arith.constant 0 : index
    %24 = vector.load %arg7[%c0_14, %c0_15] : memref<16x512xbf16, #tpu.memory_space<vmem>>, vector<16x512xbf16>
    %cst_16 = arith.constant dense<0.000000e+00> : vector<16x512xf32>
    %25 = tpu.matmul %23, %24, %cst_16 {dimension_numbers = #tpu.dot_dimension_numbers<[1], [0], [0], [1], [0, 0, 1, 1], [], []>} : vector<16x16xbf16>, vector<16x512xbf16>, vector<16x512xf32> -> vector<16x512xf32>
    %c0_17 = arith.constant 0 : index
    %c0_18 = arith.constant 0 : index
    %26 = vector.load %arg8[%c0_17, %c0_18] : memref<1x512xf32, #tpu.memory_space<vmem>>, vector<1x512xf32>
    %27 = vector.broadcast %26 : vector<1x512xf32> to vector<16x512xf32>
    %28 = arith.addf %25, %27 : vector<16x512xf32>
    %cst_19 = arith.constant 0.000000e+00 : f32
    %29 = vector.broadcast %cst_19 : f32 to vector<16x512xf32>
    %30 = arith.maximumf %28, %29 : vector<16x512xf32>
    %31 = arith.truncf %30 : vector<16x512xf32> to vector<16x512xbf16>
    %c0_20 = arith.constant 0 : index
    %c0_21 = arith.constant 0 : index
    %32 = vector.load %arg9[%c0_20, %c0_21] : memref<512x64xbf16, #tpu.memory_space<vmem>>, vector<512x64xbf16>
    %cst_22 = arith.constant dense<0.000000e+00> : vector<16x64xf32>
    %33 = tpu.matmul %31, %32, %cst_22 {dimension_numbers = #tpu.dot_dimension_numbers<[1], [0], [0], [1], [0, 0, 1, 1], [], []>} : vector<16x512xbf16>, vector<512x64xbf16>, vector<16x64xf32> -> vector<16x64xf32>
    %c0_23 = arith.constant 0 : index
    %c0_24 = arith.constant 0 : index
    %34 = vector.load %arg10[%c0_23, %c0_24] : memref<1x64xf32, #tpu.memory_space<vmem>>, vector<1x64xf32>
    %35 = vector.broadcast %34 : vector<1x64xf32> to vector<16x64xf32>
    %36 = arith.addf %33, %35 : vector<16x64xf32>
    %37 = tpu.concatenate %36, %13 in 1 : vector<16x64xf32>, vector<16x64xf32> -> vector<16x128xf32>
    %38 = arith.truncf %37 : vector<16x128xf32> to vector<16x128xbf16>
    %c0_25 = arith.constant 0 : index
    %c0_26 = arith.constant 0 : index
    %39 = vector.load %arg11[%c0_25, %c0_26] : memref<16x128xbf16, #tpu.memory_space<vmem>>, vector<16x128xbf16>
    tpu.vector_store %arg11[%c0_25, %c0_26], %38 {strides = array<i32>} : memref<16x128xbf16, #tpu.memory_space<vmem>>, vector<16x128xbf16>,
    return
  }
  func.func @transform_0(%arg0: i32) -> (i32, i32) {
    %c0_i32 = arith.constant 0 : i32
    %c0_i32_0 = arith.constant 0 : i32
    return %arg0, %c0_i32 : i32, i32
  }
  func.func @transform_1(%arg0: i32) -> (i32, i32) {
    %c0_i32 = arith.constant 0 : i32
    %c0_i32_0 = arith.constant 0 : i32
    return %arg0, %c0_i32 : i32, i32
  }
  func.func @transform_2(%arg0: i32) -> (i32, i32) {
    %c0_i32 = arith.constant 0 : i32
    %c0_i32_0 = arith.constant 0 : i32
    %c0_i32_1 = arith.constant 0 : i32
    return %c0_i32, %c0_i32_0 : i32, i32
  }
  func.func @transform_3(%arg0: i32) -> (i32, i32) {
    %c0_i32 = arith.constant 0 : i32
    %c0_i32_0 = arith.constant 0 : i32
    %c0_i32_1 = arith.constant 0 : i32
    return %c0_i32, %c0_i32_0 : i32, i32
  }
  func.func @transform_4(%arg0: i32) -> (i32, i32) {
    %c0_i32 = arith.constant 0 : i32
    %c0_i32_0 = arith.constant 0 : i32
    %c0_i32_1 = arith.constant 0 : i32
    return %c0_i32, %c0_i32_0 : i32, i32
  }
  func.func @transform_5(%arg0: i32) -> (i32, i32) {
    %c0_i32 = arith.constant 0 : i32
    %c0_i32_0 = arith.constant 0 : i32
    %c0_i32_1 = arith.constant 0 : i32
    return %c0_i32, %c0_i32_0 : i32, i32
  }
  func.func @transform_6(%arg0: i32) -> (i32, i32) {
    %c0_i32 = arith.constant 0 : i32
    %c0_i32_0 = arith.constant 0 : i32
    %c0_i32_1 = arith.constant 0 : i32
    return %c0_i32, %c0_i32_0 : i32, i32
  }
  func.func @transform_7(%arg0: i32) -> (i32, i32) {
    %c0_i32 = arith.constant 0 : i32
    %c0_i32_0 = arith.constant 0 : i32
    %c0_i32_1 = arith.constant 0 : i32
    return %c0_i32, %c0_i32_0 : i32, i32
  }
  func.func @transform_8(%arg0: i32) -> (i32, i32) {
    %c0_i32 = arith.constant 0 : i32
    %c0_i32_0 = arith.constant 0 : i32
    %c0_i32_1 = arith.constant 0 : i32
    return %c0_i32, %c0_i32_0 : i32, i32
  }
  func.func @transform_9(%arg0: i32) -> (i32, i32) {
    %c0_i32 = arith.constant 0 : i32
    %c0_i32_0 = arith.constant 0 : i32
    %c0_i32_1 = arith.constant 0 : i32
    return %c0_i32, %c0_i32_0 : i32, i32
  }
  func.func @transform_10(%arg0: i32) -> (i32, i32) {
    %c0_i32 = arith.constant 0 : i32
    %c0_i32_0 = arith.constant 0 : i32
    return %arg0, %c0_i32 : i32, i32
  }
}

</mosaic_0001>

<llo_original>
// kernel: tpu_custom_call.1
$region0: #{tpu_custom_call.1}
  #allocation0 [shape = 'u32[]', space=smem, size = 0x4, offset = 0x4, fixed_abs, tag = 'smem constant byte address 0x4 - core index']
  #allocation1 [shape = 'u32[72,128]{1,0:T(1,128)}', space=vmem, size = 0x9000, scoped, tag = 'internal scratch']
  %s0 = inlined_call_operand.vmem [shape: bf16[32,128], index: 0, kind: input, shape index: {}]
  %s1 = inlined_call_operand.vmem [shape: bf16[32,16], index: 1, kind: input, shape index: {}]
  %s2 = inlined_call_operand.vmem [shape: bf16[128,512], index: 2, kind: input, shape index: {}]
  %s3 = inlined_call_operand.vmem [shape: f32[1,512], index: 3, kind: input, shape index: {}]
  %s4 = inlined_call_operand.vmem [shape: bf16[512,64], index: 4, kind: input, shape index: {}]
  %s5 = inlined_call_operand.vmem [shape: f32[1,64], index: 5, kind: input, shape index: {}]
  %s6 = inlined_call_operand.vmem [shape: bf16[16,512], index: 6, kind: input, shape index: {}]
  %s7 = inlined_call_operand.vmem [shape: f32[1,512], index: 7, kind: input, shape index: {}]
  %s8 = inlined_call_operand.vmem [shape: bf16[512,64], index: 8, kind: input, shape index: {}]
  %s9 = inlined_call_operand.vmem [shape: f32[1,64], index: 9, kind: input, shape index: {}]
  %s10 = inlined_call_operand.hbm [shape: bf16[32,128], index: 10, kind: output, shape index: {}]
  %s11 = sld [smem:[#allocation0]]
  $region73: #{tpu_custom_call.1} parent=0
    _
  %s13 = ssub.s32 1, %s11
  %s14 = scalar_select 0, %s13, %s11
  $region1: #{tpu_custom_call.1} parent=0
    #allocation2 [shape = 'u8[8192]{0}', space=vmem, size = 0x2000, scoped, tag = 'output window, operand 0']
    #allocation3 [shape = 's32[2]{0}', space=sflag, size = 0x8, scoped, tag = 'scoped memory for tpu_custom_call.1']
    %15 = vsyncpa [#allocation3], 0
    %s16 = scalar_lea.sflag [#allocation3], 1
    %17 = vsyncpa %s16, 0
    loop: start=0, step=1, limit=4
    $region2: #{tpu_custom_call.1} parent=1 // loop_pre_header
      _
    $region3: #{tpu_custom_call.1} parent=1 // loop_header
      %s19 = sphi 0, %s23
      %p20 = scmp.ge.s32.totalorder %s19, 4
      %s29 = sphi 0, %s31
      %s32 = sphi 0, %s29
      %s33 = sphi 0, %s32
      %s49 = sphi 0, %s33
      %s55 = sphi 0, %s57
      %s58 = sphi 0, %s55
      %s59 = sphi 0, %s58
      %s75 = sphi 0, %s59
      %s79 = sphi 0, %s79
      %s81 = sphi 0, %s79
      %s82 = sphi 0, %s81
      %s96 = sphi 0, %s82
      %s100 = sphi 0, %s100
      %s102 = sphi 0, %s100
      %s103 = sphi 0, %s102
      %s117 = sphi 0, %s103
      %s121 = sphi 0, %s121
      %s123 = sphi 0, %s121
      %s124 = sphi 0, %s123
      %s138 = sphi 0, %s124
      %s142 = sphi 0, %s142
      %s144 = sphi 0, %s142
      %s145 = sphi 0, %s144
      %s159 = sphi 0, %s145
      %s163 = sphi 0, %s163
      %s165 = sphi 0, %s163
      %s166 = sphi 0, %s165
      %s180 = sphi 0, %s166
      %s184 = sphi 0, %s184
      %s186 = sphi 0, %s184
      %s187 = sphi 0, %s186
      %s201 = sphi 0, %s187
      %s205 = sphi 0, %s205
      %s207 = sphi 0, %s205
      %s208 = sphi 0, %s207
      %s222 = sphi 0, %s208
      %s226 = sphi 0, %s226
      %s228 = sphi 0, %s226
      %s229 = sphi 0, %s228
      %s243 = sphi 0, %s229
      %s249 = sphi 0, %s251
      %s252 = sphi 0, %s249
      %s253 = sphi 0, %s252
      %s269 = sphi 0, %s253
    $region4: #{tpu_custom_call.1} parent=1 // loop_header_branch
      %22 = sbr.rel (%p20) target = $region8
    $region5: #{tpu_custom_call.1} parent=1 // loop_body
      %s24 = ssub.s32 %s19, 1
      %s25 = ssub.s32 %s19, 2
      %s26 = sadd.s32 %s19, 1
      %s27 = ssub.s32 %s19, %s26
      %p28 = scmp.eq.s32.totalorder %s27, 0
      %s30 = sadd.s32 %s29, 1
      %s31 = scalar_select %p28, %s29, %s30
      %p34 = pneg %p28
      %p35 = scmp.eq.s32.totalorder %s19, 1
      %p36 = por %p34, %p35
      %p37 = scmp.ne.s32.totalorder %s29, %s32
      %p38 = scmp.eq.s32.totalorder %s19, 0
      %p39 = por %p37, %p38
      %p40 = scmp.ne.s32.totalorder %s29, %s32
      %p41 = scmp.eq.s32.totalorder %s24, 1
      %p42 = por %p40, %p41
      %p43 = scmp.ne.s32.totalorder %s32, %s33
      %p44 = scmp.eq.s32.totalorder %s24, 0
      %p45 = por %p43, %p44
      %p46 = scmp.ne.s32.totalorder %s32, %s33
      %p47 = scmp.eq.s32.totalorder %s25, 1
      %p48 = por %p46, %p47
      %p50 = scmp.ne.s32.totalorder %s33, %s49
      %p51 = scmp.eq.s32.totalorder %s25, 0
      %p52 = por %p50, %p51
      %s53 = ssub.s32 %s19, %s26
      %p54 = scmp.eq.s32.totalorder %s53, 0
      %s56 = sadd.s32 %s55, 1
      %s57 = scalar_select %p54, %s55, %s56
      %p60 = pneg %p54
      %p61 = scmp.eq.s32.totalorder %s19, 1
      %p62 = por %p60, %p61
      %p63 = scmp.ne.s32.totalorder %s55, %s58
      %p64 = scmp.eq.s32.totalorder %s19, 0
      %p65 = por %p63, %p64
      %p66 = scmp.ne.s32.totalorder %s55, %s58
      %p67 = scmp.eq.s32.totalorder %s24, 1
      %p68 = por %p66, %p67
      %p69 = scmp.ne.s32.totalorder %s58, %s59
      %p70 = scmp.eq.s32.totalorder %s24, 0
      %p71 = por %p69, %p70
      %p72 = scmp.ne.s32.totalorder %s58, %s59
      %p73 = scmp.eq.s32.totalorder %s25, 1
      %p74 = por %p72, %p73
      %p76 = scmp.ne.s32.totalorder %s59, %s75
      %p77 = scmp.eq.s32.totalorder %s25, 0
      %p78 = por %p76, %p77
      %s80 = sadd.s32 %s79, 1
      %p83 = scmp.eq.s32.totalorder %s19, 1
      %p84 = scmp.ne.s32.totalorder %s79, %s81
      %p85 = scmp.eq.s32.totalorder %s19, 0
      %p86 = por %p84, %p85
      %p87 = scmp.ne.s32.totalorder %s79, %s81
      %p88 = scmp.eq.s32.totalorder %s24, 1
      %p89 = por %p87, %p88
      %p90 = scmp.ne.s32.totalorder %s81, %s82
      %p91 = scmp.eq.s32.totalorder %s24, 0
      %p92 = por %p90, %p91
      %p93 = scmp.ne.s32.totalorder %s81, %s82
      %p94 = scmp.eq.s32.totalorder %s25, 1
      %p95 = por %p93, %p94
      %p97 = scmp.ne.s32.totalorder %s82, %s96
      %p98 = scmp.eq.s32.totalorder %s25, 0
      %p99 = por %p97, %p98
      %s101 = sadd.s32 %s100, 1
      %p104 = scmp.eq.s32.totalorder %s19, 1
      %p105 = scmp.ne.s32.totalorder %s100, %s102
      %p106 = scmp.eq.s32.totalorder %s19, 0
      %p107 = por %p105, %p106
      %p108 = scmp.ne.s32.totalorder %s100, %s102
      %p109 = scmp.eq.s32.totalorder %s24, 1
      %p110 = por %p108, %p109
      %p111 = scmp.ne.s32.totalorder %s102, %s103
      %p112 = scmp.eq.s32.totalorder %s24, 0
      %p113 = por %p111, %p112
      %p114 = scmp.ne.s32.totalorder %s102, %s103
      %p115 = scmp.eq.s32.totalorder %s25, 1
      %p116 = por %p114, %p115
      %p118 = scmp.ne.s32.totalorder %s103, %s117
      %p119 = scmp.eq.s32.totalorder %s25, 0
      %p120 = por %p118, %p119
      %s122 = sadd.s32 %s121, 1
      %p125 = scmp.eq.s32.totalorder %s19, 1
      %p126 = scmp.ne.s32.totalorder %s121, %s123
      %p127 = scmp.eq.s32.totalorder %s19, 0
      %p128 = por %p126, %p127
      %p129 = scmp.ne.s32.totalorder %s121, %s123
      %p130 = scmp.eq.s32.totalorder %s24, 1
      %p131 = por %p129, %p130
      %p132 = scmp.ne.s32.totalorder %s123, %s124
      %p133 = scmp.eq.s32.totalorder %s24, 0
      %p134 = por %p132, %p133
      %p135 = scmp.ne.s32.totalorder %s123, %s124
      %p136 = scmp.eq.s32.totalorder %s25, 1
      %p137 = por %p135, %p136
      %p139 = scmp.ne.s32.totalorder %s124, %s138
      %p140 = scmp.eq.s32.totalorder %s25, 0
      %p141 = por %p139, %p140
      %s143 = sadd.s32 %s142, 1
      %p146 = scmp.eq.s32.totalorder %s19, 1
      %p147 = scmp.ne.s32.totalorder %s142, %s144
      %p148 = scmp.eq.s32.totalorder %s19, 0
      %p149 = por %p147, %p148
      %p150 = scmp.ne.s32.totalorder %s142, %s144
      %p151 = scmp.eq.s32.totalorder %s24, 1
      %p152 = por %p150, %p151
      %p153 = scmp.ne.s32.totalorder %s144, %s145
      %p154 = scmp.eq.s32.totalorder %s24, 0
      %p155 = por %p153, %p154
      %p156 = scmp.ne.s32.totalorder %s144, %s145
      %p157 = scmp.eq.s32.totalorder %s25, 1
      %p158 = por %p156, %p157
      %p160 = scmp.ne.s32.totalorder %s145, %s159
      %p161 = scmp.eq.s32.totalorder %s25, 0
      %p162 = por %p160, %p161
      %s164 = sadd.s32 %s163, 1
      %p167 = scmp.eq.s32.totalorder %s19, 1
      %p168 = scmp.ne.s32.totalorder %s163, %s165
      %p169 = scmp.eq.s32.totalorder %s19, 0
      %p170 = por %p168, %p169
      %p171 = scmp.ne.s32.totalorder %s163, %s165
      %p172 = scmp.eq.s32.totalorder %s24, 1
      %p173 = por %p171, %p172
      %p174 = scmp.ne.s32.totalorder %s165, %s166
      %p175 = scmp.eq.s32.totalorder %s24, 0
      %p176 = por %p174, %p175
      %p177 = scmp.ne.s32.totalorder %s165, %s166
      %p178 = scmp.eq.s32.totalorder %s25, 1
      %p179 = por %p177, %p178
      %p181 = scmp.ne.s32.totalorder %s166, %s180
      %p182 = scmp.eq.s32.totalorder %s25, 0
      %p183 = por %p181, %p182
      %s185 = sadd.s32 %s184, 1
      %p188 = scmp.eq.s32.totalorder %s19, 1
      %p189 = scmp.ne.s32.totalorder %s184, %s186
      %p190 = scmp.eq.s32.totalorder %s19, 0
      %p191 = por %p189, %p190
      %p192 = scmp.ne.s32.totalorder %s184, %s186
      %p193 = scmp.eq.s32.totalorder %s24, 1
      %p194 = por %p192, %p193
      %p195 = scmp.ne.s32.totalorder %s186, %s187
      %p196 = scmp.eq.s32.totalorder %s24, 0
      %p197 = por %p195, %p196
      %p198 = scmp.ne.s32.totalorder %s186, %s187
      %p199 = scmp.eq.s32.totalorder %s25, 1
      %p200 = por %p198, %p199
      %p202 = scmp.ne.s32.totalorder %s187, %s201
      %p203 = scmp.eq.s32.totalorder %s25, 0
      %p204 = por %p202, %p203
      %s206 = sadd.s32 %s205, 1
      %p209 = scmp.eq.s32.totalorder %s19, 1
      %p210 = scmp.ne.s32.totalorder %s205, %s207
      %p211 = scmp.eq.s32.totalorder %s19, 0
      %p212 = por %p210, %p211
      %p213 = scmp.ne.s32.totalorder %s205, %s207
      %p214 = scmp.eq.s32.totalorder %s24, 1
      %p215 = por %p213, %p214
      %p216 = scmp.ne.s32.totalorder %s207, %s208
      %p217 = scmp.eq.s32.totalorder %s24, 0
      %p218 = por %p216, %p217
      %p219 = scmp.ne.s32.totalorder %s207, %s208
      %p220 = scmp.eq.s32.totalorder %s25, 1
      %p221 = por %p219, %p220
      %p223 = scmp.ne.s32.totalorder %s208, %s222
      %p224 = scmp.eq.s32.totalorder %s25, 0
      %p225 = por %p223, %p224
      %s227 = sadd.s32 %s226, 1
      %p230 = scmp.eq.s32.totalorder %s19, 1
      %p231 = scmp.ne.s32.totalorder %s226, %s228
      %p232 = scmp.eq.s32.totalorder %s19, 0
      %p233 = por %p231, %p232
      %p234 = scmp.ne.s32.totalorder %s226, %s228
      %p235 = scmp.eq.s32.totalorder %s24, 1
      %p236 = por %p234, %p235
      %p237 = scmp.ne.s32.totalorder %s228, %s229
      %p238 = scmp.eq.s32.totalorder %s24, 0
      %p239 = por %p237, %p238
      %p240 = scmp.ne.s32.totalorder %s228, %s229
      %p241 = scmp.eq.s32.totalorder %s25, 1
      %p242 = por %p240, %p241
      %p244 = scmp.ne.s32.totalorder %s229, %s243
      %p245 = scmp.eq.s32.totalorder %s25, 0
      %p246 = por %p244, %p245
      %s247 = ssub.s32 %s19, %s26
      %p248 = scmp.eq.s32.totalorder %s247, 0
      %s250 = sadd.s32 %s249, 1
      %s251 = scalar_select %p248, %s249, %s250
      %p254 = pneg %p248
      %p255 = scmp.eq.s32.totalorder %s19, 1
      %p256 = por %p254, %p255
      %p257 = scmp.ne.s32.totalorder %s249, %s252
      %p258 = scmp.eq.s32.totalorder %s19, 0
      %p259 = por %p257, %p258
      %p260 = scmp.ne.s32.totalorder %s249, %s252
      %p261 = scmp.eq.s32.totalorder %s24, 1
      %p262 = por %p260, %p261
      %p263 = scmp.ne.s32.totalorder %s252, %s253
      %p264 = scmp.eq.s32.totalorder %s24, 0
      %p265 = por %p263, %p264
      %p266 = scmp.ne.s32.totalorder %s252, %s253
      %p267 = scmp.eq.s32.totalorder %s25, 1
      %p268 = por %p266, %p267
      %p270 = scmp.ne.s32.totalorder %s253, %s269
      %p271 = scmp.eq.s32.totalorder %s25, 0
      %p272 = por %p270, %p271
      %p273 = scmp.le.s32.totalorder 1, %s19
      %p274 = scmp.lt.s32.totalorder %s19, 3
      %p275 = pnand %p273, %p274
      %p276 = pneg %p275
      // Predicated region
      $region9: #{tpu_custom_call.1} parent=5 // pred_check
        _
      $region10: #{tpu_custom_call.1} parent=5 // pred_check_branch
        %278 = sbr.rel (%p275) target = $region12
      $region11: #{tpu_custom_call.1} parent=5 // pred_region
        %s279 = ssub.s32 %s19, 1
        // Predicated region
        $region13: #{tpu_custom_call.1} parent=11 // pred_check
          %p280 = pneg %p92
        $region14: #{tpu_custom_call.1} parent=11 // pred_check_branch
          %282 = sbr.rel (%p280) target = $region16
        $region15: #{tpu_custom_call.1} parent=11 // pred_region
          _
        $region16: #{tpu_custom_call.1} parent=11 // pred_fallthru
          _
        // Predicated region
        $region17: #{tpu_custom_call.1} parent=11 // pred_check
          %p283 = pneg %p113
        $region18: #{tpu_custom_call.1} parent=11 // pred_check_branch
          %285 = sbr.rel (%p283) target = $region20
        $region19: #{tpu_custom_call.1} parent=11 // pred_region
          _
        $region20: #{tpu_custom_call.1} parent=11 // pred_fallthru
          _
        // Predicated region
        $region21: #{tpu_custom_call.1} parent=11 // pred_check
          %p286 = pneg %p134
        $region22: #{tpu_custom_call.1} parent=11 // pred_check_branch
          %288 = sbr.rel (%p286) target = $region24
        $region23: #{tpu_custom_call.1} parent=11 // pred_region
          _
        $region24: #{tpu_custom_call.1} parent=11 // pred_fallthru
          _
        // Predicated region
        $region25: #{tpu_custom_call.1} parent=11 // pred_check
          %p289 = pneg %p155
        $region26: #{tpu_custom_call.1} parent=11 // pred_check_branch
          %291 = sbr.rel (%p289) target = $region28
        $region27: #{tpu_custom_call.1} parent=11 // pred_region
          _
        $region28: #{tpu_custom_call.1} parent=11 // pred_fallthru
          _
        // Predicated region
        $region29: #{tpu_custom_call.1} parent=11 // pred_check
          %p292 = pneg %p176
        $region30: #{tpu_custom_call.1} parent=11 // pred_check_branch
          %294 = sbr.rel (%p292) target = $region32
        $region31: #{tpu_custom_call.1} parent=11 // pred_region
          _
        $region32: #{tpu_custom_call.1} parent=11 // pred_fallthru
          _
        // Predicated region
        $region33: #{tpu_custom_call.1} parent=11 // pred_check
          %p295 = pneg %p197
        $region34: #{tpu_custom_call.1} parent=11 // pred_check_branch
          %297 = sbr.rel (%p295) target = $region36
        $region35: #{tpu_custom_call.1} parent=11 // pred_region
          _
        $region36: #{tpu_custom_call.1} parent=11 // pred_fallthru
          _
        // Predicated region
        $region37: #{tpu_custom_call.1} parent=11 // pred_check
          %p298 = pneg %p218
        $region38: #{tpu_custom_call.1} parent=11 // pred_check_branch
          %300 = sbr.rel (%p298) target = $region40
        $region39: #{tpu_custom_call.1} parent=11 // pred_region
          _
        $region40: #{tpu_custom_call.1} parent=11 // pred_fallthru
          _
        // Predicated region
        $region41: #{tpu_custom_call.1} parent=11 // pred_check
          %p301 = pneg %p239
        $region42: #{tpu_custom_call.1} parent=11 // pred_check_branch
          %303 = sbr.rel (%p301) target = $region44
        $region43: #{tpu_custom_call.1} parent=11 // pred_region
          _
        $region44: #{tpu_custom_call.1} parent=11 // pred_fallthru
          _
      $region12: #{tpu_custom_call.1} parent=5 // pred_fallthru
        _
      %p304 = scmp.lt.s32.totalorder %s19, 2
      // Predicated region
      $region45: #{tpu_custom_call.1} parent=5 // pred_check
        %p305 = pneg %p304
      $region46: #{tpu_custom_call.1} parent=5 // pred_check_branch
        %307 = sbr.rel (%p305) target = $region48
      $region47: #{tpu_custom_call.1} parent=5 // pred_region
        // Predicated region
        $region49: #{tpu_custom_call.1} parent=47 // pred_check
          %p308 = pneg %p39
        $region50: #{tpu_custom_call.1} parent=47 // pred_check_branch
          %310 = sbr.rel (%p308) target = $region52
        $region51: #{tpu_custom_call.1} parent=47 // pred_region
          %s311 = smul.u32 2, %s19
          %p312 = scmp.lt.s32.totalorder %s311, 3
          %s313 = scalar_select %p312, %s311, 3
          %s314 = smul.addr %s313, 4
          %s315 = scalar_lea.vmem %s0, %s314
          %s316 = smul.u32 2, %s19
        $region52: #{tpu_custom_call.1} parent=47 // pred_fallthru
          _
        // Predicated region
        $region53: #{tpu_custom_call.1} parent=47 // pred_check
          %p317 = pneg %p65
        $region54: #{tpu_custom_call.1} parent=47 // pred_check_branch
          %319 = sbr.rel (%p317) target = $region56
        $region55: #{tpu_custom_call.1} parent=47 // pred_region
          %s320 = smul.u32 2, %s19
          %p321 = scmp.lt.s32.totalorder %s320, 3
          %s322 = scalar_select %p321, %s320, 3
          %s323 = smul.addr %s322, 4
          %s324 = scalar_lea.vmem %s1, %s323
          %s325 = smul.u32 2, %s19
        $region56: #{tpu_custom_call.1} parent=47 // pred_fallthru
          _
      $region48: #{tpu_custom_call.1} parent=5 // pred_fallthru
        _
      %p326 = scmp.le.s32.totalorder 1, %s19
      %p327 = scmp.lt.s32.totalorder %s19, 3
      %p328 = pnand %p326, %p327
      %p329 = pneg %p328
      // Predicated region
      $region57: #{tpu_custom_call.1} parent=5 // pred_check
        _
      $region58: #{tpu_custom_call.1} parent=5 // pred_check_branch
        %331 = sbr.rel (%p328) target = $region60
      $region59: #{tpu_custom_call.1} parent=5 // pred_region
        %s332 = ssub.s32 %s19, 1
        %s333 = smul.u32 2, %s24
        %p334 = scmp.lt.s32.totalorder %s333, 3
        %s335 = scalar_select %p334, %s333, 3
        %s336 = smul.addr %s335, 4
        %s337 = scalar_lea.vmem %s0, %s336
        %p338 = pneg %p45
        %p339 = pneg %p42
        %s340 = smul.u32 2, %s24
        %p341 = scmp.lt.s32.totalorder %s340, 3
        %s342 = scalar_select %p341, %s340, 3
        %s343 = smul.addr %s342, 4
        %s344 = scalar_lea.vmem %s1, %s343
        %p345 = pneg %p71
        %p346 = pneg %p68
        %p347 = pneg %p92
        %p348 = pneg %p89
        %p349 = pneg %p113
        %p350 = pneg %p110
        %p351 = pneg %p134
        %p352 = pneg %p131
        %p353 = pneg %p155
        %p354 = pneg %p152
        %p355 = pneg %p176
        %p356 = pneg %p173
        %p357 = pneg %p197
        %p358 = pneg %p194
        %p359 = pneg %p218
        %p360 = pneg %p215
        %p361 = pneg %p239
        %p362 = pneg %p236
        %p363 = pneg %p265
        %p364 = pneg %p262
        %s365 = sand.u32 %s252, 1
        %s366 = scalar_lea.sflag [#allocation3], %s365
        %s367 = sand.u32 %s252, 1
        %s368 = smul.addr %s367, 8
        %s369 = scalar_lea.vmem [#allocation2], %s368
        %s370 = smul.u32 2, %s24
        %p371 = scmp.lt.s32.totalorder %s370, 3
        %s372 = scalar_select %p371, %s370, 3
        %s373 = smul.addr %s372, 4
        %s374 = scalar_lea.vmem %s0, %s373
        %s375 = smul.u32 2, %s24
        %s376 = smul.u32 2, %s24
        %p377 = scmp.lt.s32.totalorder %s376, 3
        %s378 = scalar_select %p377, %s376, 3
        %s379 = smul.addr %s378, 4
        %s380 = scalar_lea.vmem %s1, %s379
        %s381 = smul.u32 2, %s24
        %s382 = smul.u32 2, %s24
        %v384 = vld [vmem:[%s374] sm:$0xf]
        %v385 = vld [vmem:[%s374 + $0x4] sm:$0xf]
        %v386 = vld [vmem:[%s2] sm:$0xff]
        %v387 = vld [vmem:[%s2 + $0x8] sm:$0xff]
        %v388 = vld [vmem:[%s2 + $0x10] sm:$0xff]
        %v389 = vld [vmem:[%s2 + $0x18] sm:$0xff]
        %v390 = vld [vmem:[%s2 + $0x20] sm:$0xff]
        %v391 = vld [vmem:[%s2 + $0x28] sm:$0xff]
        %v392 = vld [vmem:[%s2 + $0x30] sm:$0xff]
        %v393 = vld [vmem:[%s2 + $0x38] sm:$0xff]
        %v394 = vld [vmem:[%s2 + $0x40] sm:$0xff]
        %v395 = vld [vmem:[%s2 + $0x48] sm:$0xff]
        %v396 = vld [vmem:[%s2 + $0x50] sm:$0xff]
        %v397 = vld [vmem:[%s2 + $0x58] sm:$0xff]
        %v398 = vld [vmem:[%s2 + $0x60] sm:$0xff]
        %v399 = vld [vmem:[%s2 + $0x68] sm:$0xff]
        %v400 = vld [vmem:[%s2 + $0x70] sm:$0xff]
        %v401 = vld [vmem:[%s2 + $0x78] sm:$0xff]
        %v402 = vld [vmem:[%s2 + $0x80] sm:$0xff]
        %v403 = vld [vmem:[%s2 + $0x88] sm:$0xff]
        %v404 = vld [vmem:[%s2 + $0x90] sm:$0xff]
        %v405 = vld [vmem:[%s2 + $0x98] sm:$0xff]
        %v406 = vld [vmem:[%s2 + $0xa0] sm:$0xff]
        %v407 = vld [vmem:[%s2 + $0xa8] sm:$0xff]
        %v408 = vld [vmem:[%s2 + $0xb0] sm:$0xff]
        %v409 = vld [vmem:[%s2 + $0xb8] sm:$0xff]
        %v410 = vld [vmem:[%s2 + $0xc0] sm:$0xff]
        %v411 = vld [vmem:[%s2 + $0xc8] sm:$0xff]
        %v412 = vld [vmem:[%s2 + $0xd0] sm:$0xff]
        %v413 = vld [vmem:[%s2 + $0xd8] sm:$0xff]
        %v414 = vld [vmem:[%s2 + $0xe0] sm:$0xff]
        %v415 = vld [vmem:[%s2 + $0xe8] sm:$0xff]
        %v416 = vld [vmem:[%s2 + $0xf0] sm:$0xff]
        %v417 = vld [vmem:[%s2 + $0xf8] sm:$0xff]
        %v418 = vld [vmem:[%s3] sm:$0xf]
        %v420 = vperm.slane %v418, 0
        %v421 = vperm.slane %v418, 1
        %v422 = vperm.slane %v418, 2
        %v423 = vperm.slane %v418, 3
        %v430 = vunpack.c.l.b16 %v384
        %v431 = vunpack.c.l.b16 %v385
        %v432 = vpack.c.b16 %v431, %v430
        %v466 = vunpack.c.l.b16 %v386
        %v467 = vunpack.c.h.b16 %v386
        %v468 = vunpack.c.l.b16 %v387
        %v469 = vunpack.c.h.b16 %v387
        %v470 = vunpack.c.l.b16 %v388
        %v471 = vunpack.c.h.b16 %v388
        %v472 = vunpack.c.l.b16 %v389
        %v473 = vunpack.c.h.b16 %v389
        %v474 = vunpack.c.l.b16 %v390
        %v475 = vunpack.c.h.b16 %v390
        %v476 = vunpack.c.l.b16 %v391
        %v477 = vunpack.c.h.b16 %v391
        %v478 = vunpack.c.l.b16 %v392
        %v479 = vunpack.c.h.b16 %v392
        %v480 = vunpack.c.l.b16 %v393
        %v481 = vunpack.c.h.b16 %v393
        %v482 = vunpack.c.l.b16 %v394
        %v483 = vunpack.c.h.b16 %v394
        %v484 = vunpack.c.l.b16 %v395
        %v485 = vunpack.c.h.b16 %v395
        %v486 = vunpack.c.l.b16 %v396
        %v487 = vunpack.c.h.b16 %v396
        %v488 = vunpack.c.l.b16 %v397
        %v489 = vunpack.c.h.b16 %v397
        %v490 = vunpack.c.l.b16 %v398
        %v491 = vunpack.c.h.b16 %v398
        %v492 = vunpack.c.l.b16 %v399
        %v493 = vunpack.c.h.b16 %v399
        %v494 = vunpack.c.l.b16 %v400
        %v495 = vunpack.c.h.b16 %v400
        %v496 = vunpack.c.l.b16 %v401
        %v497 = vunpack.c.h.b16 %v401
        %v498 = vunpack.c.l.b16 %v402
        %v499 = vunpack.c.h.b16 %v402
        %v500 = vunpack.c.l.b16 %v403
        %v501 = vunpack.c.h.b16 %v403
        %v502 = vunpack.c.l.b16 %v404
        %v503 = vunpack.c.h.b16 %v404
        %v504 = vunpack.c.l.b16 %v405
        %v505 = vunpack.c.h.b16 %v405
        %v506 = vunpack.c.l.b16 %v406
        %v507 = vunpack.c.h.b16 %v406
        %v508 = vunpack.c.l.b16 %v407
        %v509 = vunpack.c.h.b16 %v407
        %v510 = vunpack.c.l.b16 %v408
        %v511 = vunpack.c.h.b16 %v408
        %v512 = vunpack.c.l.b16 %v409
        %v513 = vunpack.c.h.b16 %v409
        %v514 = vunpack.c.l.b16 %v410
        %v515 = vunpack.c.h.b16 %v410
        %v516 = vunpack.c.l.b16 %v411
        %v517 = vunpack.c.h.b16 %v411
        %v518 = vunpack.c.l.b16 %v412
        %v519 = vunpack.c.h.b16 %v412
        %v520 = vunpack.c.l.b16 %v413
        %v521 = vunpack.c.h.b16 %v413
        %v522 = vunpack.c.l.b16 %v414
        %v523 = vunpack.c.h.b16 %v414
        %v524 = vunpack.c.l.b16 %v415
        %v525 = vunpack.c.h.b16 %v415
        %v526 = vunpack.c.l.b16 %v416
        %v527 = vunpack.c.h.b16 %v416
        %v528 = vunpack.c.l.b16 %v417
        %v529 = vunpack.c.h.b16 %v417
        %v530 = vpack.c.b16 %v470, %v466
        %v531 = vpack.c.b16 %v471, %v467
        %v532 = vpack.c.b16 %v472, %v468
        %v533 = vpack.c.b16 %v473, %v469
        %v534 = vpack.c.b16 %v478, %v474
        %v535 = vpack.c.b16 %v479, %v475
        %v536 = vpack.c.b16 %v480, %v476
        %v537 = vpack.c.b16 %v481, %v477
        %v538 = vpack.c.b16 %v486, %v482
        %v539 = vpack.c.b16 %v487, %v483
        %v540 = vpack.c.b16 %v488, %v484
        %v541 = vpack.c.b16 %v489, %v485
        %v542 = vpack.c.b16 %v494, %v490
        %v543 = vpack.c.b16 %v495, %v491
        %v544 = vpack.c.b16 %v496, %v492
        %v545 = vpack.c.b16 %v497, %v493
        %v546 = vpack.c.b16 %v502, %v498
        %v547 = vpack.c.b16 %v503, %v499
        %v548 = vpack.c.b16 %v504, %v500
        %v549 = vpack.c.b16 %v505, %v501
        %v550 = vpack.c.b16 %v510, %v506
        %v551 = vpack.c.b16 %v511, %v507
        %v552 = vpack.c.b16 %v512, %v508
        %v553 = vpack.c.b16 %v513, %v509
        %v554 = vpack.c.b16 %v518, %v514
        %v555 = vpack.c.b16 %v519, %v515
        %v556 = vpack.c.b16 %v520, %v516
        %v557 = vpack.c.b16 %v521, %v517
        %v558 = vpack.c.b16 %v526, %v522
        %v559 = vpack.c.b16 %v527, %v523
        %v560 = vpack.c.b16 %v528, %v524
        %v561 = vpack.c.b16 %v529, %v525
        %594 = vmatpush.bf16.msra.mxu0 %v558
        %595 = vmatpush.bf16.msra.mxu0 %v554
        %596 = vmatpush.bf16.msra.mxu0 %v550
        %597 = vmatpush.bf16.msra.mxu0 %v546
        %598 = vmatpush.bf16.msra.mxu0 %v542
        %599 = vmatpush.bf16.msra.mxu0 %v538
        %600 = vmatpush.bf16.msra.mxu0 %v534
        %601 = vmatpush.bf16.msra.mxu0 %v530
        %602 = vmatmul.bf16.gmra.mxu0 %v432
        %v603 = vpop.f32.mrf.mxu0
        %v604 = vadd.f32 %v420, %v603
        %v605 = vpop.f32.mrf.mxu0
        %v606 = vadd.f32 %v420, %v605
        %607 = vdwg.mxu0
        %608 = vmatpush.bf16.msra.mxu0 %v559
        %609 = vmatpush.bf16.msra.mxu0 %v555
        %610 = vmatpush.bf16.msra.mxu0 %v551
        %611 = vmatpush.bf16.msra.mxu0 %v547
        %612 = vmatpush.bf16.msra.mxu0 %v543
        %613 = vmatpush.bf16.msra.mxu0 %v539
        %614 = vmatpush.bf16.msra.mxu0 %v535
        %615 = vmatpush.bf16.msra.mxu0 %v531
        %616 = vmatmul.bf16.gmra.mxu0 %v432
        %v617 = vpop.f32.mrf.mxu0
        %v618 = vadd.f32 %v421, %v617
        %v619 = vpop.f32.mrf.mxu0
        %v620 = vadd.f32 %v421, %v619
        %621 = vdwg.mxu0
        %622 = vmatpush.bf16.msra.mxu0 %v560
        %623 = vmatpush.bf16.msra.mxu0 %v556
        %624 = vmatpush.bf16.msra.mxu0 %v552
        %625 = vmatpush.bf16.msra.mxu0 %v548
        %626 = vmatpush.bf16.msra.mxu0 %v544
        %627 = vmatpush.bf16.msra.mxu0 %v540
        %628 = vmatpush.bf16.msra.mxu0 %v536
        %629 = vmatpush.bf16.msra.mxu0 %v532
        %630 = vmatmul.bf16.gmra.mxu0 %v432
        %v631 = vpop.f32.mrf.mxu0
        %v632 = vadd.f32 %v422, %v631
        %v633 = vpop.f32.mrf.mxu0
        %v634 = vadd.f32 %v422, %v633
        %635 = vdwg.mxu0
        %636 = vmatpush.bf16.msra.mxu0 %v561
        %637 = vmatpush.bf16.msra.mxu0 %v557
        %638 = vmatpush.bf16.msra.mxu0 %v553
        %639 = vmatpush.bf16.msra.mxu0 %v549
        %640 = vmatpush.bf16.msra.mxu0 %v545
        %641 = vmatpush.bf16.msra.mxu0 %v541
        %642 = vmatpush.bf16.msra.mxu0 %v537
        %643 = vmatpush.bf16.msra.mxu0 %v533
        %644 = vmatmul.bf16.gmra.mxu0 %v432
        %v645 = vpop.f32.mrf.mxu0
        %v646 = vadd.f32 %v423, %v645
        %v647 = vpop.f32.mrf.mxu0
        %v648 = vadd.f32 %v423, %v647
        %649 = vdwg.mxu0
        %v650 = vmax.f32 %v604, 0.0
        %v651 = vmax.f32 %v618, 0.0
        %v652 = vmax.f32 %v632, 0.0
        %v653 = vmax.f32 %v646, 0.0
        %v654 = vmax.f32 %v606, 0.0
        %v655 = vmax.f32 %v620, 0.0
        %v656 = vmax.f32 %v634, 0.0
        %v657 = vmax.f32 %v648, 0.0
        %v658 = vpack.c.bf16 %v654, %v650
        %v659 = vpack.c.bf16 %v655, %v651
        %v660 = vpack.c.bf16 %v656, %v652
        %v661 = vpack.c.bf16 %v657, %v653
        %v662 = vld [vmem:[%s4] sm:$0xf]
        %v663 = vld [vmem:[%s4 + $0x4] sm:$0xf]
        %v664 = vld [vmem:[%s4 + $0x8] sm:$0xf]
        %v665 = vld [vmem:[%s4 + $0xc] sm:$0xf]
        %v666 = vld [vmem:[%s4 + $0x10] sm:$0xf]
        %v667 = vld [vmem:[%s4 + $0x14] sm:$0xf]
        %v668 = vld [vmem:[%s4 + $0x18] sm:$0xf]
        %v669 = vld [vmem:[%s4 + $0x1c] sm:$0xf]
        %v670 = vld [vmem:[%s4 + $0x20] sm:$0xf]
        %v671 = vld [vmem:[%s4 + $0x24] sm:$0xf]
        %v672 = vld [vmem:[%s4 + $0x28] sm:$0xf]
        %v673 = vld [vmem:[%s4 + $0x2c] sm:$0xf]
        %v674 = vld [vmem:[%s4 + $0x30] sm:$0xf]
        %v675 = vld [vmem:[%s4 + $0x34] sm:$0xf]
        %v676 = vld [vmem:[%s4 + $0x38] sm:$0xf]
        %v677 = vld [vmem:[%s4 + $0x3c] sm:$0xf]
        %v678 = vld [vmem:[%s4 + $0x40] sm:$0xf]
        %v679 = vld [vmem:[%s4 + $0x44] sm:$0xf]
        %v680 = vld [vmem:[%s4 + $0x48] sm:$0xf]
        %v681 = vld [vmem:[%s4 + $0x4c] sm:$0xf]
        %v682 = vld [vmem:[%s4 + $0x50] sm:$0xf]
        %v683 = vld [vmem:[%s4 + $0x54] sm:$0xf]
        %v684 = vld [vmem:[%s4 + $0x58] sm:$0xf]
        %v685 = vld [vmem:[%s4 + $0x5c] sm:$0xf]
        %v686 = vld [vmem:[%s4 + $0x60] sm:$0xf]
        %v687 = vld [vmem:[%s4 + $0x64] sm:$0xf]
        %v688 = vld [vmem:[%s4 + $0x68] sm:$0xf]
        %v689 = vld [vmem:[%s4 + $0x6c] sm:$0xf]
        %v690 = vld [vmem:[%s4 + $0x70] sm:$0xf]
        %v691 = vld [vmem:[%s4 + $0x74] sm:$0xf]
        %v692 = vld [vmem:[%s4 + $0x78] sm:$0xf]
        %v693 = vld [vmem:[%s4 + $0x7c] sm:$0xf]
        %v694 = vld [vmem:[%s4 + $0x80] sm:$0xf]
        %v695 = vld [vmem:[%s4 + $0x84] sm:$0xf]
        %v696 = vld [vmem:[%s4 + $0x88] sm:$0xf]
        %v697 = vld [vmem:[%s4 + $0x8c] sm:$0xf]
        %v698 = vld [vmem:[%s4 + $0x90] sm:$0xf]
        %v699 = vld [vmem:[%s4 + $0x94] sm:$0xf]
        %v700 = vld [vmem:[%s4 + $0x98] sm:$0xf]
        %v701 = vld [vmem:[%s4 + $0x9c] sm:$0xf]
        %v702 = vld [vmem:[%s4 + $0xa0] sm:$0xf]
        %v703 = vld [vmem:[%s4 + $0xa4] sm:$0xf]
        %v704 = vld [vmem:[%s4 + $0xa8] sm:$0xf]
        %v705 = vld [vmem:[%s4 + $0xac] sm:$0xf]
        %v706 = vld [vmem:[%s4 + $0xb0] sm:$0xf]
        %v707 = vld [vmem:[%s4 + $0xb4] sm:$0xf]
        %v708 = vld [vmem:[%s4 + $0xb8] sm:$0xf]
        %v709 = vld [vmem:[%s4 + $0xbc] sm:$0xf]
        %v710 = vld [vmem:[%s4 + $0xc0] sm:$0xf]
        %v711 = vld [vmem:[%s4 + $0xc4] sm:$0xf]
        %v712 = vld [vmem:[%s4 + $0xc8] sm:$0xf]
        %v713 = vld [vmem:[%s4 + $0xcc] sm:$0xf]
        %v714 = vld [vmem:[%s4 + $0xd0] sm:$0xf]
        %v715 = vld [vmem:[%s4 + $0xd4] sm:$0xf]
        %v716 = vld [vmem:[%s4 + $0xd8] sm:$0xf]
        %v717 = vld [vmem:[%s4 + $0xdc] sm:$0xf]
        %v718 = vld [vmem:[%s4 + $0xe0] sm:$0xf]
        %v719 = vld [vmem:[%s4 + $0xe4] sm:$0xf]
        %v720 = vld [vmem:[%s4 + $0xe8] sm:$0xf]
        %v721 = vld [vmem:[%s4 + $0xec] sm:$0xf]
        %v722 = vld [vmem:[%s4 + $0xf0] sm:$0xf]
        %v723 = vld [vmem:[%s4 + $0xf4] sm:$0xf]
        %v724 = vld [vmem:[%s4 + $0xf8] sm:$0xf]
        %v725 = vld [vmem:[%s4 + $0xfc] sm:$0xf]
        %v726 = vld [vmem:[%s5] sm:$0x1]
        %v728 = vperm.slane %v726, 0
        %v794 = vunpack.c.l.b16 %v662
        %v795 = vunpack.c.l.b16 %v663
        %v796 = vunpack.c.l.b16 %v664
        %v797 = vunpack.c.l.b16 %v665
        %v798 = vunpack.c.l.b16 %v666
        %v799 = vunpack.c.l.b16 %v667
        %v800 = vunpack.c.l.b16 %v668
        %v801 = vunpack.c.l.b16 %v669
        %v802 = vunpack.c.l.b16 %v670
        %v803 = vunpack.c.l.b16 %v671
        %v804 = vunpack.c.l.b16 %v672
        %v805 = vunpack.c.l.b16 %v673
        %v806 = vunpack.c.l.b16 %v674
        %v807 = vunpack.c.l.b16 %v675
        %v808 = vunpack.c.l.b16 %v676
        %v809 = vunpack.c.l.b16 %v677
        %v810 = vunpack.c.l.b16 %v678
        %v811 = vunpack.c.l.b16 %v679
        %v812 = vunpack.c.l.b16 %v680
        %v813 = vunpack.c.l.b16 %v681
        %v814 = vunpack.c.l.b16 %v682
        %v815 = vunpack.c.l.b16 %v683
        %v816 = vunpack.c.l.b16 %v684
        %v817 = vunpack.c.l.b16 %v685
        %v818 = vunpack.c.l.b16 %v686
        %v819 = vunpack.c.l.b16 %v687
        %v820 = vunpack.c.l.b16 %v688
        %v821 = vunpack.c.l.b16 %v689
        %v822 = vunpack.c.l.b16 %v690
        %v823 = vunpack.c.l.b16 %v691
        %v824 = vunpack.c.l.b16 %v692
        %v825 = vunpack.c.l.b16 %v693
        %v826 = vunpack.c.l.b16 %v694
        %v827 = vunpack.c.l.b16 %v695
        %v828 = vunpack.c.l.b16 %v696
        %v829 = vunpack.c.l.b16 %v697
        %v830 = vunpack.c.l.b16 %v698
        %v831 = vunpack.c.l.b16 %v699
        %v832 = vunpack.c.l.b16 %v700
        %v833 = vunpack.c.l.b16 %v701
        %v834 = vunpack.c.l.b16 %v702
        %v835 = vunpack.c.l.b16 %v703
        %v836 = vunpack.c.l.b16 %v704
        %v837 = vunpack.c.l.b16 %v705
        %v838 = vunpack.c.l.b16 %v706
        %v839 = vunpack.c.l.b16 %v707
        %v840 = vunpack.c.l.b16 %v708
        %v841 = vunpack.c.l.b16 %v709
        %v842 = vunpack.c.l.b16 %v710
        %v843 = vunpack.c.l.b16 %v711
        %v844 = vunpack.c.l.b16 %v712
        %v845 = vunpack.c.l.b16 %v713
        %v846 = vunpack.c.l.b16 %v714
        %v847 = vunpack.c.l.b16 %v715
        %v848 = vunpack.c.l.b16 %v716
        %v849 = vunpack.c.l.b16 %v717
        %v850 = vunpack.c.l.b16 %v718
        %v851 = vunpack.c.l.b16 %v719
        %v852 = vunpack.c.l.b16 %v720
        %v853 = vunpack.c.l.b16 %v721
        %v854 = vunpack.c.l.b16 %v722
        %v855 = vunpack.c.l.b16 %v723
        %v856 = vunpack.c.l.b16 %v724
        %v857 = vunpack.c.l.b16 %v725
        %v858 = vpack.c.b16 %v795, %v794
        %v859 = vpack.c.b16 %v797, %v796
        %v860 = vpack.c.b16 %v799, %v798
        %v861 = vpack.c.b16 %v801, %v800
        %v862 = vpack.c.b16 %v803, %v802
        %v863 = vpack.c.b16 %v805, %v804
        %v864 = vpack.c.b16 %v807, %v806
        %v865 = vpack.c.b16 %v809, %v808
        %v866 = vpack.c.b16 %v811, %v810
        %v867 = vpack.c.b16 %v813, %v812
        %v868 = vpack.c.b16 %v815, %v814
        %v869 = vpack.c.b16 %v817, %v816
        %v870 = vpack.c.b16 %v819, %v818
        %v871 = vpack.c.b16 %v821, %v820
        %v872 = vpack.c.b16 %v823, %v822
        %v873 = vpack.c.b16 %v825, %v824
        %v874 = vpack.c.b16 %v827, %v826
        %v875 = vpack.c.b16 %v829, %v828
        %v876 = vpack.c.b16 %v831, %v830
        %v877 = vpack.c.b16 %v833, %v832
        %v878 = vpack.c.b16 %v835, %v834
        %v879 = vpack.c.b16 %v837, %v836
        %v880 = vpack.c.b16 %v839, %v838
        %v881 = vpack.c.b16 %v841, %v840
        %v882 = vpack.c.b16 %v843, %v842
        %v883 = vpack.c.b16 %v845, %v844
        %v884 = vpack.c.b16 %v847, %v846
        %v885 = vpack.c.b16 %v849, %v848
        %v886 = vpack.c.b16 %v851, %v850
        %v887 = vpack.c.b16 %v853, %v852
        %v888 = vpack.c.b16 %v855, %v854
        %v889 = vpack.c.b16 %v857, %v856
        %922 = vmatpush.bf16.msra.mxu0 %v865
        %923 = vmatpush.bf16.msra.mxu0 %v864
        %924 = vmatpush.bf16.msra.mxu0 %v863
        %925 = vmatpush.bf16.msra.mxu0 %v862
        %926 = vmatpush.bf16.msra.mxu0 %v861
        %927 = vmatpush.bf16.msra.mxu0 %v860
        %928 = vmatpush.bf16.msra.mxu0 %v859
        %929 = vmatpush.bf16.msra.mxu0 %v858
        %930 = vmatmul.bf16.gmra.mxu0 %v658
        %v931 = vpop.f32.mrf.mxu0
        %v932 = vadd.f32 %v728, %v931
        %v933 = vpop.f32.mrf.mxu0
        %v934 = vadd.f32 %v728, %v933
        %935 = vdwg.mxu0
        %936 = vmatpush.bf16.msra.mxu0 %v873
        %937 = vmatpush.bf16.msra.mxu0 %v872
        %938 = vmatpush.bf16.msra.mxu0 %v871
        %939 = vmatpush.bf16.msra.mxu0 %v870
        %940 = vmatpush.bf16.msra.mxu0 %v869
        %941 = vmatpush.bf16.msra.mxu0 %v868
        %942 = vmatpush.bf16.msra.mxu0 %v867
        %943 = vmatpush.bf16.msra.mxu0 %v866
        %944 = vmatmul.bf16.gmra.mxu0 %v659
        %v945 = vpop.f32.mrf.mxu0
        %v946 = vadd.f32 %v932, %v945
        %v947 = vpop.f32.mrf.mxu0
        %v948 = vadd.f32 %v934, %v947
        %949 = vdwg.mxu0
        %950 = vmatpush.bf16.msra.mxu0 %v881
        %951 = vmatpush.bf16.msra.mxu0 %v880
        %952 = vmatpush.bf16.msra.mxu0 %v879
        %953 = vmatpush.bf16.msra.mxu0 %v878
        %954 = vmatpush.bf16.msra.mxu0 %v877
        %955 = vmatpush.bf16.msra.mxu0 %v876
        %956 = vmatpush.bf16.msra.mxu0 %v875
        %957 = vmatpush.bf16.msra.mxu0 %v874
        %958 = vmatmul.bf16.gmra.mxu0 %v660
        %v959 = vpop.f32.mrf.mxu0
        %v960 = vadd.f32 %v946, %v959
        %v961 = vpop.f32.mrf.mxu0
        %v962 = vadd.f32 %v948, %v961
        %963 = vdwg.mxu0
        %964 = vmatpush.bf16.msra.mxu0 %v889
        %965 = vmatpush.bf16.msra.mxu0 %v888
        %966 = vmatpush.bf16.msra.mxu0 %v887
        %967 = vmatpush.bf16.msra.mxu0 %v886
        %968 = vmatpush.bf16.msra.mxu0 %v885
        %969 = vmatpush.bf16.msra.mxu0 %v884
        %970 = vmatpush.bf16.msra.mxu0 %v883
        %971 = vmatpush.bf16.msra.mxu0 %v882
        %972 = vmatmul.bf16.gmra.mxu0 %v661
        %v973 = vpop.f32.mrf.mxu0
        %v974 = vadd.f32 %v960, %v973
        %v975 = vpop.f32.mrf.mxu0
        %v976 = vadd.f32 %v962, %v975
        %977 = vdwg.mxu0
        %v978 = vmul.f32 %v974, 0.5
        %v979 = vmul.f32 %v976, 0.5
        %v980 = vmul.f32 %v978, 1.442695
        %v981 = vpow.pop %v980
        %v982 = vmul.f32 %v979, 1.442695
        %v983 = vpow.pop %v982
        %v984 = vld [vmem:[%s380] sm:$0xf]
        %v985 = vld [vmem:[%s380 + $0x4] sm:$0xf]
        %v986 = vunpack.c.l.bf16 %v984
        %v987 = vunpack.c.l.bf16 %v985
        %990 = vrot.lane.b32.xlu0 %v981, 112
        %v991 = vpop.permute.xlu0 %990
        %992 = vrot.lane.b32.xlu0 %v983, 112
        %v993 = vpop.permute.xlu0 %992
        %v996 = vmul.f32 %v986, %v991
        %v997 = vmul.f32 %v987, %v993
        %v998 = vadd.f32 %v974, %v996
        %v999 = vadd.f32 %v976, %v997
        %v1000 = vpack.c.bf16 %v999, %v998
        %v1001 = vld [vmem:[%s6] sm:$0xff]
        %v1002 = vld [vmem:[%s6 + $0x8] sm:$0xff]
        %v1003 = vld [vmem:[%s6 + $0x10] sm:$0xff]
        %v1004 = vld [vmem:[%s6 + $0x18] sm:$0xff]
        %v1005 = vld [vmem:[%s7] sm:$0xf]
        %v1007 = vperm.slane %v1005, 0
        %v1008 = vperm.slane %v1005, 1
        %v1009 = vperm.slane %v1005, 2
        %v1010 = vperm.slane %v1005, 3
        %v1019 = vunpack.c.l.b16 %v1001
        %v1020 = vunpack.c.h.b16 %v1001
        %v1021 = vunpack.c.l.b16 %v1002
        %v1022 = vunpack.c.h.b16 %v1002
        %v1023 = vunpack.c.l.b16 %v1003
        %v1024 = vunpack.c.h.b16 %v1003
        %v1025 = vunpack.c.l.b16 %v1004
        %v1026 = vunpack.c.h.b16 %v1004
        %v1027 = vpack.c.b16 %v1023, %v1019
        %v1028 = vpack.c.b16 %v1024, %v1020
        %v1029 = vpack.c.b16 %v1025, %v1021
        %v1030 = vpack.c.b16 %v1026, %v1022
        %vm1035 = vcmask 130048
        %v1037 = vsel %vm1035, %v1000, 0
        %1039 = vmatpush.bf16.msra.mxu0 0
        %1040 = vmatpush.bf16.msra.mxu0 0
        %1041 = vmatpush.bf16.msra.mxu0 0
        %1042 = vmatpush.bf16.msra.mxu0 0
        %1043 = vmatpush.bf16.msra.mxu0 0
        %1044 = vmatpush.bf16.msra.mxu0 0
        %1045 = vmatpush.bf16.msra.mxu0 0
        %1046 = vmatpush.bf16.msra.mxu0 %v1027
        %1047 = vmatmul.bf16.gmra.mxu0 %v1037
        %v1048 = vpop.f32.mrf.mxu0
        %v1049 = vadd.f32 %v1007, %v1048
        %v1050 = vpop.f32.mrf.mxu0
        %v1051 = vadd.f32 %v1007, %v1050
        %1052 = vdwg.mxu0
        %1053 = vmatpush.bf16.msra.mxu0 0
        %1054 = vmatpush.bf16.msra.mxu0 0
        %1055 = vmatpush.bf16.msra.mxu0 0
        %1056 = vmatpush.bf16.msra.mxu0 0
        %1057 = vmatpush.bf16.msra.mxu0 0
        %1058 = vmatpush.bf16.msra.mxu0 0
        %1059 = vmatpush.bf16.msra.mxu0 0
        %1060 = vmatpush.bf16.msra.mxu0 %v1028
        %1061 = vmatmul.bf16.gmra.mxu0 %v1037
        %v1062 = vpop.f32.mrf.mxu0
        %v1063 = vadd.f32 %v1008, %v1062
        %v1064 = vpop.f32.mrf.mxu0
        %v1065 = vadd.f32 %v1008, %v1064
        %1066 = vdwg.mxu0
        %1067 = vmatpush.bf16.msra.mxu0 0
        %1068 = vmatpush.bf16.msra.mxu0 0
        %1069 = vmatpush.bf16.msra.mxu0 0
        %1070 = vmatpush.bf16.msra.mxu0 0
        %1071 = vmatpush.bf16.msra.mxu0 0
        %1072 = vmatpush.bf16.msra.mxu0 0
        %1073 = vmatpush.bf16.msra.mxu0 0
        %1074 = vmatpush.bf16.msra.mxu0 %v1029
        %1075 = vmatmul.bf16.gmra.mxu0 %v1037
        %v1076 = vpop.f32.mrf.mxu0
        %v1077 = vadd.f32 %v1009, %v1076
        %v1078 = vpop.f32.mrf.mxu0
        %v1079 = vadd.f32 %v1009, %v1078
        %1080 = vdwg.mxu0
        %1081 = vmatpush.bf16.msra.mxu0 0
        %1082 = vmatpush.bf16.msra.mxu0 0
        %1083 = vmatpush.bf16.msra.mxu0 0
        %1084 = vmatpush.bf16.msra.mxu0 0
        %1085 = vmatpush.bf16.msra.mxu0 0
        %1086 = vmatpush.bf16.msra.mxu0 0
        %1087 = vmatpush.bf16.msra.mxu0 0
        %1088 = vmatpush.bf16.msra.mxu0 %v1030
        %1089 = vmatmul.bf16.gmra.mxu0 %v1037
        %v1090 = vpop.f32.mrf.mxu0
        %v1091 = vadd.f32 %v1010, %v1090
        %v1092 = vpop.f32.mrf.mxu0
        %v1093 = vadd.f32 %v1010, %v1092
        %1094 = vdwg.mxu0
        %v1095 = vmax.f32 %v1049, 0.0
        %v1096 = vmax.f32 %v1063, 0.0
        %v1097 = vmax.f32 %v1077, 0.0
        %v1098 = vmax.f32 %v1091, 0.0
        %v1099 = vmax.f32 %v1051, 0.0
        %v1100 = vmax.f32 %v1065, 0.0
        %v1101 = vmax.f32 %v1079, 0.0
        %v1102 = vmax.f32 %v1093, 0.0
        %v1103 = vpack.c.bf16 %v1099, %v1095
        %v1104 = vpack.c.bf16 %v1100, %v1096
        %v1105 = vpack.c.bf16 %v1101, %v1097
        %v1106 = vpack.c.bf16 %v1102, %v1098
        %v1107 = vld [vmem:[%s8] sm:$0xf]
        %v1108 = vld [vmem:[%s8 + $0x4] sm:$0xf]
        %v1109 = vld [vmem:[%s8 + $0x8] sm:$0xf]
        %v1110 = vld [vmem:[%s8 + $0xc] sm:$0xf]
        %v1111 = vld [vmem:[%s8 + $0x10] sm:$0xf]
        %v1112 = vld [vmem:[%s8 + $0x14] sm:$0xf]
        %v1113 = vld [vmem:[%s8 + $0x18] sm:$0xf]
        %v1114 = vld [vmem:[%s8 + $0x1c] sm:$0xf]
        %v1115 = vld [vmem:[%s8 + $0x20] sm:$0xf]
        %v1116 = vld [vmem:[%s8 + $0x24] sm:$0xf]
        %v1117 = vld [vmem:[%s8 + $0x28] sm:$0xf]
        %v1118 = vld [vmem:[%s8 + $0x2c] sm:$0xf]
        %v1119 = vld [vmem:[%s8 + $0x30] sm:$0xf]
        %v1120 = vld [vmem:[%s8 + $0x34] sm:$0xf]
        %v1121 = vld [vmem:[%s8 + $0x38] sm:$0xf]
        %v1122 = vld [vmem:[%s8 + $0x3c] sm:$0xf]
        %v1123 = vld [vmem:[%s8 + $0x40] sm:$0xf]
        %v1124 = vld [vmem:[%s8 + $0x44] sm:$0xf]
        %v1125 = vld [vmem:[%s8 + $0x48] sm:$0xf]
        %v1126 = vld [vmem:[%s8 + $0x4c] sm:$0xf]
        %v1127 = vld [vmem:[%s8 + $0x50] sm:$0xf]
        %v1128 = vld [vmem:[%s8 + $0x54] sm:$0xf]
        %v1129 = vld [vmem:[%s8 + $0x58] sm:$0xf]
        %v1130 = vld [vmem:[%s8 + $0x5c] sm:$0xf]
        %v1131 = vld [vmem:[%s8 + $0x60] sm:$0xf]
        %v1132 = vld [vmem:[%s8 + $0x64] sm:$0xf]
        %v1133 = vld [vmem:[%s8 + $0x68] sm:$0xf]
        %v1134 = vld [vmem:[%s8 + $0x6c] sm:$0xf]
        %v1135 = vld [vmem:[%s8 + $0x70] sm:$0xf]
        %v1136 = vld [vmem:[%s8 + $0x74] sm:$0xf]
        %v1137 = vld [vmem:[%s8 + $0x78] sm:$0xf]
        %v1138 = vld [vmem:[%s8 + $0x7c] sm:$0xf]
        %v1139 = vld [vmem:[%s8 + $0x80] sm:$0xf]
        %v1140 = vld [vmem:[%s8 + $0x84] sm:$0xf]
        %v1141 = vld [vmem:[%s8 + $0x88] sm:$0xf]
        %v1142 = vld [vmem:[%s8 + $0x8c] sm:$0xf]
        %v1143 = vld [vmem:[%s8 + $0x90] sm:$0xf]
        %v1144 = vld [vmem:[%s8 + $0x94] sm:$0xf]
        %v1145 = vld [vmem:[%s8 + $0x98] sm:$0xf]
        %v1146 = vld [vmem:[%s8 + $0x9c] sm:$0xf]
        %v1147 = vld [vmem:[%s8 + $0xa0] sm:$0xf]
        %v1148 = vld [vmem:[%s8 + $0xa4] sm:$0xf]
        %v1149 = vld [vmem:[%s8 + $0xa8] sm:$0xf]
        %v1150 = vld [vmem:[%s8 + $0xac] sm:$0xf]
        %v1151 = vld [vmem:[%s8 + $0xb0] sm:$0xf]
        %v1152 = vld [vmem:[%s8 + $0xb4] sm:$0xf]
        %v1153 = vld [vmem:[%s8 + $0xb8] sm:$0xf]
        %v1154 = vld [vmem:[%s8 + $0xbc] sm:$0xf]
        %v1155 = vld [vmem:[%s8 + $0xc0] sm:$0xf]
        %v1156 = vld [vmem:[%s8 + $0xc4] sm:$0xf]
        %v1157 = vld [vmem:[%s8 + $0xc8] sm:$0xf]
        %v1158 = vld [vmem:[%s8 + $0xcc] sm:$0xf]
        %v1159 = vld [vmem:[%s8 + $0xd0] sm:$0xf]
        %v1160 = vld [vmem:[%s8 + $0xd4] sm:$0xf]
        %v1161 = vld [vmem:[%s8 + $0xd8] sm:$0xf]
        %v1162 = vld [vmem:[%s8 + $0xdc] sm:$0xf]
        %v1163 = vld [vmem:[%s8 + $0xe0] sm:$0xf]
        %v1164 = vld [vmem:[%s8 + $0xe4] sm:$0xf]
        %v1165 = vld [vmem:[%s8 + $0xe8] sm:$0xf]
        %v1166 = vld [vmem:[%s8 + $0xec] sm:$0xf]
        %v1167 = vld [vmem:[%s8 + $0xf0] sm:$0xf]
        %v1168 = vld [vmem:[%s8 + $0xf4] sm:$0xf]
        %v1169 = vld [vmem:[%s8 + $0xf8] sm:$0xf]
        %v1170 = vld [vmem:[%s8 + $0xfc] sm:$0xf]
        %v1171 = vld [vmem:[%s9] sm:$0x1]
        %v1173 = vperm.slane %v1171, 0
        %v1239 = vunpack.c.l.b16 %v1107
        %v1240 = vunpack.c.l.b16 %v1108
        %v1241 = vunpack.c.l.b16 %v1109
        %v1242 = vunpack.c.l.b16 %v1110
        %v1243 = vunpack.c.l.b16 %v1111
        %v1244 = vunpack.c.l.b16 %v1112
        %v1245 = vunpack.c.l.b16 %v1113
        %v1246 = vunpack.c.l.b16 %v1114
        %v1247 = vunpack.c.l.b16 %v1115
        %v1248 = vunpack.c.l.b16 %v1116
        %v1249 = vunpack.c.l.b16 %v1117
        %v1250 = vunpack.c.l.b16 %v1118
        %v1251 = vunpack.c.l.b16 %v1119
        %v1252 = vunpack.c.l.b16 %v1120
        %v1253 = vunpack.c.l.b16 %v1121
        %v1254 = vunpack.c.l.b16 %v1122
        %v1255 = vunpack.c.l.b16 %v1123
        %v1256 = vunpack.c.l.b16 %v1124
        %v1257 = vunpack.c.l.b16 %v1125
        %v1258 = vunpack.c.l.b16 %v1126
        %v1259 = vunpack.c.l.b16 %v1127
        %v1260 = vunpack.c.l.b16 %v1128
        %v1261 = vunpack.c.l.b16 %v1129
        %v1262 = vunpack.c.l.b16 %v1130
        %v1263 = vunpack.c.l.b16 %v1131
        %v1264 = vunpack.c.l.b16 %v1132
        %v1265 = vunpack.c.l.b16 %v1133
        %v1266 = vunpack.c.l.b16 %v1134
        %v1267 = vunpack.c.l.b16 %v1135
        %v1268 = vunpack.c.l.b16 %v1136
        %v1269 = vunpack.c.l.b16 %v1137
        %v1270 = vunpack.c.l.b16 %v1138
        %v1271 = vunpack.c.l.b16 %v1139
        %v1272 = vunpack.c.l.b16 %v1140
        %v1273 = vunpack.c.l.b16 %v1141
        %v1274 = vunpack.c.l.b16 %v1142
        %v1275 = vunpack.c.l.b16 %v1143
        %v1276 = vunpack.c.l.b16 %v1144
        %v1277 = vunpack.c.l.b16 %v1145
        %v1278 = vunpack.c.l.b16 %v1146
        %v1279 = vunpack.c.l.b16 %v1147
        %v1280 = vunpack.c.l.b16 %v1148
        %v1281 = vunpack.c.l.b16 %v1149
        %v1282 = vunpack.c.l.b16 %v1150
        %v1283 = vunpack.c.l.b16 %v1151
        %v1284 = vunpack.c.l.b16 %v1152
        %v1285 = vunpack.c.l.b16 %v1153
        %v1286 = vunpack.c.l.b16 %v1154
        %v1287 = vunpack.c.l.b16 %v1155
        %v1288 = vunpack.c.l.b16 %v1156
        %v1289 = vunpack.c.l.b16 %v1157
        %v1290 = vunpack.c.l.b16 %v1158
        %v1291 = vunpack.c.l.b16 %v1159
        %v1292 = vunpack.c.l.b16 %v1160
        %v1293 = vunpack.c.l.b16 %v1161
        %v1294 = vunpack.c.l.b16 %v1162
        %v1295 = vunpack.c.l.b16 %v1163
        %v1296 = vunpack.c.l.b16 %v1164
        %v1297 = vunpack.c.l.b16 %v1165
        %v1298 = vunpack.c.l.b16 %v1166
        %v1299 = vunpack.c.l.b16 %v1167
        %v1300 = vunpack.c.l.b16 %v1168
        %v1301 = vunpack.c.l.b16 %v1169
        %v1302 = vunpack.c.l.b16 %v1170
        %v1303 = vpack.c.b16 %v1240, %v1239
        %v1304 = vpack.c.b16 %v1242, %v1241
        %v1305 = vpack.c.b16 %v1244, %v1243
        %v1306 = vpack.c.b16 %v1246, %v1245
        %v1307 = vpack.c.b16 %v1248, %v1247
        %v1308 = vpack.c.b16 %v1250, %v1249
        %v1309 = vpack.c.b16 %v1252, %v1251
        %v1310 = vpack.c.b16 %v1254, %v1253
        %v1311 = vpack.c.b16 %v1256, %v1255
        %v1312 = vpack.c.b16 %v1258, %v1257
        %v1313 = vpack.c.b16 %v1260, %v1259
        %v1314 = vpack.c.b16 %v1262, %v1261
        %v1315 = vpack.c.b16 %v1264, %v1263
        %v1316 = vpack.c.b16 %v1266, %v1265
        %v1317 = vpack.c.b16 %v1268, %v1267
        %v1318 = vpack.c.b16 %v1270, %v1269
        %v1319 = vpack.c.b16 %v1272, %v1271
        %v1320 = vpack.c.b16 %v1274, %v1273
        %v1321 = vpack.c.b16 %v1276, %v1275
        %v1322 = vpack.c.b16 %v1278, %v1277
        %v1323 = vpack.c.b16 %v1280, %v1279
        %v1324 = vpack.c.b16 %v1282, %v1281
        %v1325 = vpack.c.b16 %v1284, %v1283
        %v1326 = vpack.c.b16 %v1286, %v1285
        %v1327 = vpack.c.b16 %v1288, %v1287
        %v1328 = vpack.c.b16 %v1290, %v1289
        %v1329 = vpack.c.b16 %v1292, %v1291
        %v1330 = vpack.c.b16 %v1294, %v1293
        %v1331 = vpack.c.b16 %v1296, %v1295
        %v1332 = vpack.c.b16 %v1298, %v1297
        %v1333 = vpack.c.b16 %v1300, %v1299
        %v1334 = vpack.c.b16 %v1302, %v1301
        %1367 = vmatpush.bf16.msra.mxu0 %v1310
        %1368 = vmatpush.bf16.msra.mxu0 %v1309
        %1369 = vmatpush.bf16.msra.mxu0 %v1308
        %1370 = vmatpush.bf16.msra.mxu0 %v1307
        %1371 = vmatpush.bf16.msra.mxu0 %v1306
        %1372 = vmatpush.bf16.msra.mxu0 %v1305
        %1373 = vmatpush.bf16.msra.mxu0 %v1304
        %1374 = vmatpush.bf16.msra.mxu0 %v1303
        %1375 = vmatmul.bf16.gmra.mxu0 %v1103
        %v1376 = vpop.f32.mrf.mxu0
        %v1377 = vadd.f32 %v1173, %v1376
        %v1378 = vpop.f32.mrf.mxu0
        %v1379 = vadd.f32 %v1173, %v1378
        %1380 = vdwg.mxu0
        %1381 = vmatpush.bf16.msra.mxu0 %v1318
        %1382 = vmatpush.bf16.msra.mxu0 %v1317
        %1383 = vmatpush.bf16.msra.mxu0 %v1316
        %1384 = vmatpush.bf16.msra.mxu0 %v1315
        %1385 = vmatpush.bf16.msra.mxu0 %v1314
        %1386 = vmatpush.bf16.msra.mxu0 %v1313
        %1387 = vmatpush.bf16.msra.mxu0 %v1312
        %1388 = vmatpush.bf16.msra.mxu0 %v1311
        %1389 = vmatmul.bf16.gmra.mxu0 %v1104
        %v1390 = vpop.f32.mrf.mxu0
        %v1391 = vadd.f32 %v1377, %v1390
        %v1392 = vpop.f32.mrf.mxu0
        %v1393 = vadd.f32 %v1379, %v1392
        %1394 = vdwg.mxu0
        %1395 = vmatpush.bf16.msra.mxu0 %v1326
        %1396 = vmatpush.bf16.msra.mxu0 %v1325
        %1397 = vmatpush.bf16.msra.mxu0 %v1324
        %1398 = vmatpush.bf16.msra.mxu0 %v1323
        %1399 = vmatpush.bf16.msra.mxu0 %v1322
        %1400 = vmatpush.bf16.msra.mxu0 %v1321
        %1401 = vmatpush.bf16.msra.mxu0 %v1320
        %1402 = vmatpush.bf16.msra.mxu0 %v1319
        %1403 = vmatmul.bf16.gmra.mxu0 %v1105
        %v1404 = vpop.f32.mrf.mxu0
        %v1405 = vadd.f32 %v1391, %v1404
        %v1406 = vpop.f32.mrf.mxu0
        %v1407 = vadd.f32 %v1393, %v1406
        %1408 = vdwg.mxu0
        %1409 = vmatpush.bf16.msra.mxu0 %v1334
        %1410 = vmatpush.bf16.msra.mxu0 %v1333
        %1411 = vmatpush.bf16.msra.mxu0 %v1332
        %1412 = vmatpush.bf16.msra.mxu0 %v1331
        %1413 = vmatpush.bf16.msra.mxu0 %v1330
        %1414 = vmatpush.bf16.msra.mxu0 %v1329
        %1415 = vmatpush.bf16.msra.mxu0 %v1328
        %1416 = vmatpush.bf16.msra.mxu0 %v1327
        %1417 = vmatmul.bf16.gmra.mxu0 %v1106
        %v1418 = vpop.f32.mrf.mxu0
        %v1419 = vadd.f32 %v1405, %v1418
        %v1420 = vpop.f32.mrf.mxu0
        %v1421 = vadd.f32 %v1407, %v1420
        %1422 = vdwg.mxu0
        %1425 = vrot.lane.b32.xlu0 %v974, 64
        %v1426 = vpop.permute.xlu0 %1425
        %1427 = vrot.lane.b32.xlu0 %v976, 64
        %v1428 = vpop.permute.xlu0 %1427
        %vm1431 = vcmask 523264
        %v1432 = vsel %vm1431, %v1419, %v1426
        %v1433 = vsel %vm1431, %v1421, %v1428
        %v1434 = vpack.c.bf16 %v1432, %v1432
        %v1435 = vpack.c.bf16 %v1433, %v1433
        %1436 = vst [vmem:[%s369] sm:$0xf] %v1434
        %1437 = vst [vmem:[%s369 + $0x4] sm:$0xf] %v1435
        %s1438 = sand.u32 %s252, 1
        %s1439 = scalar_lea.sflag [#allocation3], %s1438
        %s1440 = sand.u32 %s252, 1
        %s1441 = smul.addr %s1440, 8
        %s1442 = scalar_lea.vmem [#allocation2], %s1441
        // Predicated region
        $region61: #{tpu_custom_call.1} parent=59 // pred_check
          %p1443 = pneg %p262
        $region62: #{tpu_custom_call.1} parent=59 // pred_check_branch
          %1445 = sbr.rel (%p1443) target = $region64
        $region63: #{tpu_custom_call.1} parent=59 // pred_region
          %s1446 = smul.u32 2, %s24
          %1448 = vsyncadd %s1439, 0
          %s1449 = smul.addr %s1446, 4
          %s1450 = scalar_lea.hbm %s10, %s1449
          %s1451 = sshll.u32 %s1442, 4
          %s1452 = int_to_ptr.vmem [resolvable:$true] %s1451
          %s1453 = sshll.u32 %s1450, 4
          %s1454 = int_to_ptr.hbm [resolvable:$true] %s1453
          %1459 = dma.vmem_to_hbm [thread:$0]  %s1452, 128, %s1454, %s1439, 64, 64, 4
        $region64: #{tpu_custom_call.1} parent=59 // pred_fallthru
          _
      $region60: #{tpu_custom_call.1} parent=5 // pred_fallthru
        _
      %p1460 = scmp.le.s32.totalorder 2, %s19
      // Predicated region
      $region65: #{tpu_custom_call.1} parent=5 // pred_check
        %p1461 = pneg %p1460
      $region66: #{tpu_custom_call.1} parent=5 // pred_check_branch
        %1463 = sbr.rel (%p1461) target = $region68
      $region67: #{tpu_custom_call.1} parent=5 // pred_region
        %s1464 = ssub.s32 %s19, 2
        // Predicated region
        $region69: #{tpu_custom_call.1} parent=67 // pred_check
          %p1465 = pneg %p268
        $region70: #{tpu_custom_call.1} parent=67 // pred_check_branch
          %1467 = sbr.rel (%p1465) target = $region72
        $region71: #{tpu_custom_call.1} parent=67 // pred_region
          %s1468 = sand.u32 %s253, 1
          %s1469 = scalar_lea.sflag [#allocation3], %s1468
          %s1470 = sand.u32 %s253, 1
          %s1471 = smul.addr %s1470, 8
          %s1472 = scalar_lea.vmem [#allocation2], %s1471
          %1474 = dma.done %s1469, 128
        $region72: #{tpu_custom_call.1} parent=67 // pred_fallthru
          _
      $region68: #{tpu_custom_call.1} parent=5 // pred_fallthru
        _
    $region6: #{tpu_custom_call.1} parent=1 // loop_footer
      %s23 = sadd.s32 1, %s19
    $region7: #{tpu_custom_call.1} parent=1 // loop_footer_branch
      %18 = sbr.rel target = $region3
    $region8: #{tpu_custom_call.1} parent=1 // loop_exit
      _
    %1475 = vsyncpa [#allocation3], 1
    %s1476 = scalar_lea.sflag [#allocation3], 1
    %1477 = vsyncpa %s1476, 1

</llo_original>
